<compile_context>
chip_gen: v6e
topology: v6e:2x2x1
jax: 0.10.0
libtpu: 0.0.40
codegen_flags: <defaults>
</compile_context>

<pallas_src>
import math

import jax
import jax.numpy as jnp
from jax.experimental import pallas as pl
from jax.experimental.pallas import tpu as pltpu


def _budgets():
    """(per-buffer tile bytes, scoped VMEM limit bytes), generation-aware."""
    try:
        vmem = getattr(pltpu.get_tpu_info(), "vmem_capacity_bytes", 0)
    except Exception:
        vmem = 0
    if vmem >= 96 * 1024 * 1024:
        # v5e / v6e: 128 MiB physical VMEM -> bigger tiles, fewer grid steps.
        return 8 * 1024 * 1024, 64 * 1024 * 1024
    # v7x (64 MiB per TensorCore) or unknown chip: stay conservative.
    return 4 * 1024 * 1024, 32 * 1024 * 1024


def _pick_lane_tile(dim, max_tile):
    """Lane (last-dim) tile: full dim if it fits, else a 128-multiple (exact
    divisor preferred, otherwise the cap itself with a masked cdiv edge)."""
    if dim <= max_tile:
        return dim
    best = 0
    t = 128
    while t <= max_tile:
        if dim % t == 0:
            best = t
        t += 128
    return best if best else (max_tile // 128) * 128


def _pick_sublane_tile(dim, align, max_tile):
    """Sublane (second-minor) tile: full dim if it fits, else an `align`
    multiple (exact divisor preferred, otherwise capped with a masked edge)."""
    max_tile = max(align, max_tile)
    if dim <= max_tile:
        return dim
    best = 0
    t = align
    while t <= max_tile:
        if dim % t == 0:
            best = t
        t += align
    return best if best else (max_tile // align) * align


def _pick_lead_tile(dim, max_tile):
    """Leading-dim tile: largest divisor of `dim` that fits (leading block
    dims have no alignment constraint).  Capped to bound in-kernel loop size."""
    max_tile = min(dim, max(1, min(max_tile, 256)))
    for t in range(max_tile, 0, -1):
        if dim % t == 0:
            return t
    return 1


def _pick_fold_b_tile(b, a, sub_align, max_b):
    """B tile for the folded-output path: (tB*A) must be a 128-multiple and tB
    sublane-aligned (a full-B block is always legal).  Returns 0 if no such
    tile fits the per-buffer budget (fold path not viable)."""
    if b <= max_b:
        return b
    need = 128 // math.gcd(a, 128)                       # (tB*A) % 128 == 0
    unit = sub_align * need // math.gcd(sub_align, need)  # also tB % sub_align == 0
    if unit > max_b:
        return 0
    best = 0
    t = unit
    while t <= max_b:
        if b % t == 0:
            best = t
        t += unit
    return best if best else (max_b // unit) * unit


def _for_each_lead(tl, fn):
    """Apply fn(l) for l in [0, tl).  tl is a static Python int."""
    if tl == 1:
        fn(0)
    elif tl <= 8:
        for l in range(tl):          # short fixed trip count: full unroll
            fn(l)
    else:
        def body(l, carry):
            fn(l)
            return carry
        jax.lax.fori_loop(0, tl, body, 0)


def _transpose_kernel(x_ref, o_ref):
    # x block: (tL, tA, tB, tC) -> o block: (tL, tC, tB, tA)
    # TODO(synk): evaluate pltpu.einshape("abc->cba") and confirm it lowers to
    # XLU vxpose; jnp.transpose is the known-good lowering kept here.
    def one(l):
        o_ref[l] = jnp.transpose(x_ref[l], (2, 1, 0))
    _for_each_lead(x_ref.shape[0], one)


def _transpose_fold_kernel(x_ref, o_ref):
    # x block: (tL, A, tB, tC) -> o block: (tL, tC, tB*A)  (lane-dense store)
    tl, a, tb, tc = x_ref.shape

    def one(l):
        t = jnp.transpose(x_ref[l], (2, 1, 0))           # (tC, tB, A)
        o_ref[l] = t.reshape(tc, tb * a)
    _for_each_lead(tl, one)


def _permute_last3(x):
    """(L, A, B, C) -> (L, C, B, A); the transpose is done inside Pallas."""
    L, A, B, C = x.shape
    itemsize = x.dtype.itemsize
    tile_bytes, vmem_limit = _budgets()
    budget_elems = max(1, tile_bytes // itemsize)
    sub_align = max(8, 32 // itemsize)          # 8 (f32) / 16 (bf16) / 32 (int8)

    # Dtype-aware lane cap (~1 KiB DMA runs), shrunk so a (max_lane, sub_align,
    # max_lane) tile still fits inside the per-buffer budget.
    max_lane = max(128, (1024 // itemsize) // 128 * 128)
    while max_lane > 128 and max_lane * max_lane * sub_align > budget_elems:
        max_lane -= 128

    cost = pl.CostEstimate(flops=0, transcendentals=0,
                           bytes_accessed=2 * x.size * itemsize)

    def ordered(counts):
        """Largest block-count axis leads the grid (v7x megacore shards the
        leading parallel axis; L is often 1 and would waste it)."""
        order = sorted(range(len(counts)), key=lambda i: -counts[i])
        pos = [0] * len(counts)
        for gp, ax in enumerate(order):
            pos[ax] = gp
        return tuple(counts[i] for i in order), tuple(pos)

    # ---- Lane-fold path: A genuinely narrow -> fold B into the output lane dim.
    use_fold = (A % 128 != 0) and (A * itemsize <= 512)
    tB = tC = 0
    if use_fold:
        tC = _pick_lane_tile(C, max_lane)
        max_b = max(1, budget_elems // max(1, A * tC))
        tB = _pick_fold_b_tile(B, A, sub_align, max_b)
        if tB == 0:
            use_fold = False                    # no budget-fitting fold tile

    if use_fold:
        tL = _pick_lead_tile(L, max(1, budget_elems // max(1, A * tB * tC)))
        counts = (pl.cdiv(L, tL), pl.cdiv(B, tB), pl.cdiv(C, tC))
        grid, (pL, pB, pC) = ordered(counts)

        def in_map(i0, i1, i2):
            g = (i0, i1, i2)
            return (g[pL], 0, g[pB], g[pC])

        def out_map(i0, i1, i2):
            g = (i0, i1, i2)
            return (g[pL], g[pC], g[pB])

        out = pl.pallas_call(
            _transpose_fold_kernel,
            out_shape=jax.ShapeDtypeStruct((L, C, B * A), x.dtype),
            grid=grid,
            in_specs=[pl.BlockSpec((tL, A, tB, tC), in_map)],
            out_specs=pl.BlockSpec((tL, tC, tB * A), out_map),
            compiler_params=pltpu.CompilerParams(
                dimension_semantics=("parallel",) * len(grid),
                vmem_limit_bytes=vmem_limit),
            cost_estimate=cost,
        )(x)
        # Splitting the trailing (B*A) dim back into (B, A) is free.
        return out.reshape(L, C, B, A)

    # ---- General path: tile all three trailing dims; output lane dim is tA.
    tA = _pick_lane_tile(A, max_lane)
    tC = _pick_lane_tile(C, max_lane)
    max_b = max(sub_align, budget_elems // max(1, tA * tC))
    tB = _pick_sublane_tile(B, sub_align, max_b)
    tL = _pick_lead_tile(L, max(1, budget_elems // max(1, tA * tB * tC)))
    counts = (pl.cdiv(L, tL), pl.cdiv(A, tA), pl.cdiv(B, tB), pl.cdiv(C, tC))
    grid, (pL, pA, pB, pC) = ordered(counts)

    def in_map(i0, i1, i2, i3):
        g = (i0, i1, i2, i3)
        return (g[pL], g[pA], g[pB], g[pC])

    def out_map(i0, i1, i2, i3):
        g = (i0, i1, i2, i3)
        return (g[pL], g[pC], g[pB], g[pA])

    return pl.pallas_call(
        _transpose_kernel,
        out_shape=jax.ShapeDtypeStruct((L, C, B, A), x.dtype),
        grid=grid,
        in_specs=[pl.BlockSpec((tL, tA, tB, tC), in_map)],
        out_specs=pl.BlockSpec((tL, tC, tB, tA), out_map),
        compiler_params=pltpu.CompilerParams(
            dimension_semantics=("parallel",) * len(grid),
            vmem_limit_bytes=vmem_limit),
        cost_estimate=cost,
    )(x)


def smart_permute(x):
    """JAX/Pallas equivalent of SmartPermute.forward."""
    if x.ndim == 5:
        if x.size == 0:
            return jnp.transpose(x, (0, 1, 4, 3, 2))
        N, D1, D2, D3, D4 = x.shape
        out = _permute_last3(x.reshape(N * D1, D2, D3, D4))   # (N*D1, D4, D3, D2)
        return out.reshape(N, D1, D4, D3, D2)
    if x.ndim == 4:
        if x.size == 0:
            return jnp.transpose(x, (0, 3, 2, 1))
        return _permute_last3(x)                               # (N, W, H, C)
    raise ValueError(f"Unexpected input dimension {x.ndim} for SmartPermute")


if __name__ == "__main__":
    key = jax.random.PRNGKey(0)
    k4, k5, k6, k7, k8 = jax.random.split(key, 5)

    # 4D NCHW, narrow channel dim (lane-fold path, L folded into the tile).
    x4 = jax.random.normal(k4, (2, 4, 16, 16), dtype=jnp.float32)
    y4 = jax.block_until_ready(smart_permute(x4))
    assert y4.shape == (2, 16, 16, 4)
    assert jnp.array_equal(y4, jnp.transpose(x4, (0, 3, 2, 1)))

    # 5D case (lane-fold path after merging the two leading dims).
    x5 = jax.random.normal(k5, (2, 3, 4, 8, 16), dtype=jnp.float32)
    y5 = jax.block_until_ready(smart_permute(x5))
    assert y5.shape == (2, 3, 16, 8, 4)
    assert jnp.array_equal(y5, jnp.transpose(x5, (0, 1, 4, 3, 2)))

    # 4D with 128-aligned dims (general multi-tile path; A/C axes lead the grid).
    x6 = jax.random.normal(k6, (1, 384, 8, 384), dtype=jnp.float32)
    y6 = jax.block_until_ready(smart_permute(x6))
    assert y6.shape == (1, 384, 8, 384)
    assert jnp.array_equal(y6, jnp.transpose(x6, (0, 3, 2, 1)))

    # Non-divisible lane dim (pl.cdiv grid with masked edge blocks).
    x7 = jax.random.normal(k7, (1, 320, 8, 64), dtype=jnp.float32)
    y7 = jax.block_until_ready(smart_permute(x7))
    assert y7.shape == (1, 64, 8, 320)
    assert jnp.array_equal(y7, jnp.transpose(x7, (0, 3, 2, 1)))

    # bf16 fold path (dtype-aware sublane alignment / lane caps).
    x8 = jax.random.normal(k8, (2, 4, 8, 32), dtype=jnp.bfloat16)
    y8 = jax.block_until_ready(smart_permute(x8))
    assert y8.shape == (2, 32, 8, 4)
    assert jnp.array_equal(y8, jnp.transpose(x8, (0, 3, 2, 1)))

    print("KERNEL_OK")
</pallas_src>

<mosaic_0001>
module attributes {stable_mosaic.version = 11 : i64} {
  func.func @_transpose_fold_kernel(%arg0: i32, %arg1: i32, %arg2: i32, %arg3: memref<2x4x16x16xf32, #tpu.memory_space<vmem>>, %arg4: memref<2x16x64xf32, #tpu.memory_space<vmem>>) attributes {dimension_semantics = [#tpu.dimension_semantics<parallel>, #tpu.dimension_semantics<parallel>, #tpu.dimension_semantics<parallel>], iteration_bounds = array<i64: 1, 1, 1>, scalar_prefetch = 0 : i64, scratch_operands = 0 : i64, tpu.core_type = #tpu.core_type<tc>, window_params = [{transform_indices = @transform_0, window_bounds = array<i64: 2, 4, 16, 16>}, {transform_indices = @transform_1, window_bounds = array<i64: 2, 16, 64>}]} {
    %c0 = arith.constant 0 : index
    %c0_0 = arith.constant 0 : index
    %c0_1 = arith.constant 0 : index
    %c0_2 = arith.constant 0 : index
    %0 = vector.load %arg3[%c0, %c0_0, %c0_1, %c0_2] : memref<2x4x16x16xf32, #tpu.memory_space<vmem>>, vector<1x4x16x16xf32>
    %1 = vector.shape_cast %0 : vector<1x4x16x16xf32> to vector<4x16x16xf32>
    %2 = tpu.transpose %1, [2, 1, 0] : vector<4x16x16xf32> -> vector<16x16x4xf32>
    %3 = vector.shape_cast %2 : vector<16x16x4xf32> to vector<16x64xf32>
    %c0_3 = arith.constant 0 : index
    %c0_4 = arith.constant 0 : index
    %c0_5 = arith.constant 0 : index
    %4 = vector.load %arg4[%c0_3, %c0_4, %c0_5] : memref<2x16x64xf32, #tpu.memory_space<vmem>>, vector<1x16x64xf32>
    %5 = vector.shape_cast %4 : vector<1x16x64xf32> to vector<16x64xf32>
    %6 = vector.shape_cast %3 : vector<16x64xf32> to vector<1x16x64xf32>
    tpu.vector_store %arg4[%c0_3, %c0_4, %c0_5], %6 {strides = array<i32>} : memref<2x16x64xf32, #tpu.memory_space<vmem>>, vector<1x16x64xf32>,
    %c1 = arith.constant 1 : index
    %c0_6 = arith.constant 0 : index
    %c0_7 = arith.constant 0 : index
    %c0_8 = arith.constant 0 : index
    %7 = vector.load %arg3[%c1, %c0_6, %c0_7, %c0_8] : memref<2x4x16x16xf32, #tpu.memory_space<vmem>>, vector<1x4x16x16xf32>
    %8 = vector.shape_cast %7 : vector<1x4x16x16xf32> to vector<4x16x16xf32>
    %9 = tpu.transpose %8, [2, 1, 0] : vector<4x16x16xf32> -> vector<16x16x4xf32>
    %10 = vector.shape_cast %9 : vector<16x16x4xf32> to vector<16x64xf32>
    %c1_9 = arith.constant 1 : index
    %c0_10 = arith.constant 0 : index
    %c0_11 = arith.constant 0 : index
    %11 = vector.load %arg4[%c1_9, %c0_10, %c0_11] : memref<2x16x64xf32, #tpu.memory_space<vmem>>, vector<1x16x64xf32>
    %12 = vector.shape_cast %11 : vector<1x16x64xf32> to vector<16x64xf32>
    %13 = vector.shape_cast %10 : vector<16x64xf32> to vector<1x16x64xf32>
    tpu.vector_store %arg4[%c1_9, %c0_10, %c0_11], %13 {strides = array<i32>} : memref<2x16x64xf32, #tpu.memory_space<vmem>>, vector<1x16x64xf32>,
    return
  }
  func.func @transform_0(%arg0: i32, %arg1: i32, %arg2: i32) -> (i32, i32, i32, i32) {
    %c0_i32 = arith.constant 0 : i32
    %c0_i32_0 = arith.constant 0 : i32
    return %arg0, %c0_i32, %arg1, %arg2 : i32, i32, i32, i32
  }
  func.func @transform_1(%arg0: i32, %arg1: i32, %arg2: i32) -> (i32, i32, i32) {
    %c0_i32 = arith.constant 0 : i32
    return %arg0, %arg2, %arg1 : i32, i32, i32
  }
}

</mosaic_0001>

<llo_original>
// kernel: tpu_custom_call.1
$region0: #{tpu_custom_call.1}
  #allocation0 [shape = 'u32[]', space=smem, size = 0x4, offset = 0x4, fixed_abs, tag = 'smem constant byte address 0x4 - core index']
  #allocation1 [shape = 'u32[144,128]{1,0:T(1,128)}', space=vmem, size = 0x12000, scoped, tag = 'internal scratch']
  %s0 = inlined_call_operand.hbm [shape: f32[2,4,16,16], index: 0, kind: input, shape index: {}]
  %s1 = inlined_call_operand.hbm [shape: f32[2,16,64], index: 1, kind: output, shape index: {}]
  %s2 = sld [smem:[#allocation0]]
  $region18: #{tpu_custom_call.1} parent=0
    _
  %s4 = ssub.s32 1, %s2
  %s5 = scalar_select 0, %s4, %s2
  $region1: #{tpu_custom_call.1} parent=0
    #allocation2 [shape = 'u8[65536]{0}', space=vmem, size = 0x10000, scoped, tag = 'input window, operand 0, single buffered']
    #allocation3 [shape = 's32[1]{0}', space=sflag, size = 0x4, scoped, tag = 'scoped memory for tpu_custom_call.1']
    #allocation4 [shape = 's32[1]{0}', space=sflag, size = 0x4, scoped, tag = 'scoped memory for tpu_custom_call.1']
    #allocation5 [shape = 'u8[16384]{0}', space=vmem, size = 0x4000, scoped, tag = 'output window, operand 0, single buffered']
    %6 = vsyncpa [#allocation3], 0
    %7 = vsyncpa [#allocation4], 0
    // Predicated region
    $region2: #{tpu_custom_call.1} parent=1 // pred_check
      _
    $region3: #{tpu_custom_call.1} parent=1 // pred_check_branch
      %9 = sbr.rel (0) target = $region5
    $region4: #{tpu_custom_call.1} parent=1 // pred_region
      %s11 = ssub.s32 2048, 2048
      %12 = vsyncadd [#allocation3], %s11
      %s13 = sshll.u32 [#allocation2], 4
      %s14 = int_to_ptr.vmem [resolvable:$true] %s13
      %19 = dma.hbm_to_vmem [thread:$0]  %s0, 2048, %s14, [#allocation3], 128, 128, 8
    $region5: #{tpu_custom_call.1} parent=1 // pred_fallthru
      _
    // Predicated region
    $region6: #{tpu_custom_call.1} parent=1 // pred_check
      _
    $region7: #{tpu_custom_call.1} parent=1 // pred_check_branch
      %21 = sbr.rel (0) target = $region9
    $region8: #{tpu_custom_call.1} parent=1 // pred_region
      %22 = dma.done [#allocation3], 2048
    $region9: #{tpu_custom_call.1} parent=1 // pred_fallthru
      _
    %v23 = vld [vmem:[#allocation2] sm:$0xff]
    %v24 = vld [vmem:[#allocation2 + $0x8] sm:$0xff]
    %v25 = vld [vmem:[#allocation2 + $0x10] sm:$0xff]
    %v26 = vld [vmem:[#allocation2 + $0x18] sm:$0xff]
    %v27 = vld [vmem:[#allocation2 + $0x20] sm:$0xff]
    %v28 = vld [vmem:[#allocation2 + $0x28] sm:$0xff]
    %v29 = vld [vmem:[#allocation2 + $0x30] sm:$0xff]
    %v30 = vld [vmem:[#allocation2 + $0x38] sm:$0xff]
    %31 = vxpose.xlu0.b32.start [1/16] %v23, 128
    %32 = vxpose.xlu0.b32.cont [2/16] %v24, 128
    %33 = vxpose.xlu0.b32.cont [3/16] 0.0, 128
    %34 = vxpose.xlu0.b32.cont [4/16] 0.0, 128
    %35 = vxpose.xlu0.b32.cont [5/16] 0.0, 128
    %36 = vxpose.xlu0.b32.cont [6/16] 0.0, 128
    %37 = vxpose.xlu0.b32.cont [7/16] 0.0, 128
    %38 = vxpose.xlu0.b32.cont [8/16] 0.0, 128
    %39 = vxpose.xlu0.b32.cont [9/16] 0.0, 128
    %40 = vxpose.xlu0.b32.cont [10/16] 0.0, 128
    %41 = vxpose.xlu0.b32.cont [11/16] 0.0, 128
    %42 = vxpose.xlu0.b32.cont [12/16] 0.0, 128
    %43 = vxpose.xlu0.b32.cont [13/16] 0.0, 128
    %44 = vxpose.xlu0.b32.cont [14/16] 0.0, 128
    %45 = vxpose.xlu0.b32.cont [15/16] 0.0, 128
    %46 = vxpose.xlu0.b32.end [16/16] 0.0, 128
    %v47 = vpop.trf.xlu0
    %v48 = vpop.trf.xlu0
    %v49 = vpop.trf.xlu0
    %v50 = vpop.trf.xlu0
    %v51 = vpop.trf.xlu0
    %v52 = vpop.trf.xlu0
    %v53 = vpop.trf.xlu0
    %v54 = vpop.trf.xlu0
    %v55 = vpop.trf.xlu0
    %v56 = vpop.trf.xlu0
    %v57 = vpop.trf.xlu0
    %v58 = vpop.trf.xlu0
    %v59 = vpop.trf.xlu0
    %v60 = vpop.trf.xlu0
    %v61 = vpop.trf.xlu0
    %v62 = vpop.trf.xlu0
    %63 = vxpose.xlu0.b32.start [1/16] %v25, 128
    %64 = vxpose.xlu0.b32.cont [2/16] %v26, 128
    %65 = vxpose.xlu0.b32.cont [3/16] 0.0, 128
    %66 = vxpose.xlu0.b32.cont [4/16] 0.0, 128
    %67 = vxpose.xlu0.b32.cont [5/16] 0.0, 128
    %68 = vxpose.xlu0.b32.cont [6/16] 0.0, 128
    %69 = vxpose.xlu0.b32.cont [7/16] 0.0, 128
    %70 = vxpose.xlu0.b32.cont [8/16] 0.0, 128
    %71 = vxpose.xlu0.b32.cont [9/16] 0.0, 128
    %72 = vxpose.xlu0.b32.cont [10/16] 0.0, 128
    %73 = vxpose.xlu0.b32.cont [11/16] 0.0, 128
    %74 = vxpose.xlu0.b32.cont [12/16] 0.0, 128
    %75 = vxpose.xlu0.b32.cont [13/16] 0.0, 128
    %76 = vxpose.xlu0.b32.cont [14/16] 0.0, 128
    %77 = vxpose.xlu0.b32.cont [15/16] 0.0, 128
    %78 = vxpose.xlu0.b32.end [16/16] 0.0, 128
    %v79 = vpop.trf.xlu0
    %v80 = vpop.trf.xlu0
    %v81 = vpop.trf.xlu0
    %v82 = vpop.trf.xlu0
    %v83 = vpop.trf.xlu0
    %v84 = vpop.trf.xlu0
    %v85 = vpop.trf.xlu0
    %v86 = vpop.trf.xlu0
    %v87 = vpop.trf.xlu0
    %v88 = vpop.trf.xlu0
    %v89 = vpop.trf.xlu0
    %v90 = vpop.trf.xlu0
    %v91 = vpop.trf.xlu0
    %v92 = vpop.trf.xlu0
    %v93 = vpop.trf.xlu0
    %v94 = vpop.trf.xlu0
    %95 = vxpose.xlu0.b32.start [1/16] %v27, 128
    %96 = vxpose.xlu0.b32.cont [2/16] %v28, 128
    %97 = vxpose.xlu0.b32.cont [3/16] 0.0, 128
    %98 = vxpose.xlu0.b32.cont [4/16] 0.0, 128
    %99 = vxpose.xlu0.b32.cont [5/16] 0.0, 128
    %100 = vxpose.xlu0.b32.cont [6/16] 0.0, 128
    %101 = vxpose.xlu0.b32.cont [7/16] 0.0, 128
    %102 = vxpose.xlu0.b32.cont [8/16] 0.0, 128
    %103 = vxpose.xlu0.b32.cont [9/16] 0.0, 128
    %104 = vxpose.xlu0.b32.cont [10/16] 0.0, 128
    %105 = vxpose.xlu0.b32.cont [11/16] 0.0, 128
    %106 = vxpose.xlu0.b32.cont [12/16] 0.0, 128
    %107 = vxpose.xlu0.b32.cont [13/16] 0.0, 128
    %108 = vxpose.xlu0.b32.cont [14/16] 0.0, 128
    %109 = vxpose.xlu0.b32.cont [15/16] 0.0, 128
    %110 = vxpose.xlu0.b32.end [16/16] 0.0, 128
    %v111 = vpop.trf.xlu0
    %v112 = vpop.trf.xlu0
    %v113 = vpop.trf.xlu0
    %v114 = vpop.trf.xlu0
    %v115 = vpop.trf.xlu0
    %v116 = vpop.trf.xlu0
    %v117 = vpop.trf.xlu0
    %v118 = vpop.trf.xlu0
    %v119 = vpop.trf.xlu0
    %v120 = vpop.trf.xlu0
    %v121 = vpop.trf.xlu0
    %v122 = vpop.trf.xlu0
    %v123 = vpop.trf.xlu0
    %v124 = vpop.trf.xlu0
    %v125 = vpop.trf.xlu0
    %v126 = vpop.trf.xlu0
    %127 = vxpose.xlu0.b32.start [1/16] %v29, 128
    %128 = vxpose.xlu0.b32.cont [2/16] %v30, 128
    %129 = vxpose.xlu0.b32.cont [3/16] 0.0, 128
    %130 = vxpose.xlu0.b32.cont [4/16] 0.0, 128
    %131 = vxpose.xlu0.b32.cont [5/16] 0.0, 128
    %132 = vxpose.xlu0.b32.cont [6/16] 0.0, 128
    %133 = vxpose.xlu0.b32.cont [7/16] 0.0, 128
    %134 = vxpose.xlu0.b32.cont [8/16] 0.0, 128
    %135 = vxpose.xlu0.b32.cont [9/16] 0.0, 128
    %136 = vxpose.xlu0.b32.cont [10/16] 0.0, 128
    %137 = vxpose.xlu0.b32.cont [11/16] 0.0, 128
    %138 = vxpose.xlu0.b32.cont [12/16] 0.0, 128
    %139 = vxpose.xlu0.b32.cont [13/16] 0.0, 128
    %140 = vxpose.xlu0.b32.cont [14/16] 0.0, 128
    %141 = vxpose.xlu0.b32.cont [15/16] 0.0, 128
    %142 = vxpose.xlu0.b32.end [16/16] 0.0, 128
    %v143 = vpop.trf.xlu0
    %v144 = vpop.trf.xlu0
    %v145 = vpop.trf.xlu0
    %v146 = vpop.trf.xlu0
    %v147 = vpop.trf.xlu0
    %v148 = vpop.trf.xlu0
    %v149 = vpop.trf.xlu0
    %v150 = vpop.trf.xlu0
    %v151 = vpop.trf.xlu0
    %v152 = vpop.trf.xlu0
    %v153 = vpop.trf.xlu0
    %v154 = vpop.trf.xlu0
    %v155 = vpop.trf.xlu0
    %v156 = vpop.trf.xlu0
    %v157 = vpop.trf.xlu0
    %v158 = vpop.trf.xlu0
    %v159 = vcombine.low %v47, %v111
    %v160 = vcombine.high %v47, %v111
    %v162 = vunpack.c.l.s4 1983009808
    %v163 = vunpack.c.0.s8 %v162
    %v164 = vlaneseq
    %v165 = vshrl.u32 %v164, 7
    %v166 = vsub.s32 %v163, %v165
    %v167 = vrot.slane %v159, %v166
    %v169 = vunpack.c.l.s4 1983009808
    %v170 = vunpack.c.0.s8 %v169
    %v171 = vlaneseq
    %v172 = vshrl.u32 %v171, 7
    %v173 = vsub.s32 %v170, %v172
    %v174 = vrot.slane %v160, %v173
    %v175 = vcombine.low %v79, %v143
    %v176 = vcombine.high %v79, %v143
    %v178 = vunpack.c.l.s4 1983009808
    %v179 = vunpack.c.0.s8 %v178
    %v180 = vlaneseq
    %v181 = vshrl.u32 %v180, 7
    %v182 = vsub.s32 %v179, %v181
    %v183 = vrot.slane %v175, %v182
    %v185 = vunpack.c.l.s4 1983009808
    %v186 = vunpack.c.0.s8 %v185
    %v187 = vlaneseq
    %v188 = vshrl.u32 %v187, 7
    %v189 = vsub.s32 %v186, %v188
    %v190 = vrot.slane %v176, %v189
    %v191 = vcombine.low %v167, %v183
    %v192 = vcombine.high %v167, %v183
    %v194 = vunpack.c.l.s4 1934713408
    %v195 = vunpack.c.0.s8 %v194
    %v196 = vlaneseq
    %v197 = vshrl.u32 %v196, 7
    %v198 = vsub.s32 %v195, %v197
    %v199 = vrot.slane %v191, %v198
    %v201 = vunpack.c.l.s4 1934713408
    %v202 = vunpack.c.0.s8 %v201
    %v203 = vlaneseq
    %v204 = vshrl.u32 %v203, 7
    %v205 = vsub.s32 %v202, %v204
    %v206 = vrot.slane %v192, %v205
    %v207 = vcombine.low %v174, %v190
    %v208 = vcombine.high %v174, %v190
    %v210 = vunpack.c.l.s4 1934713408
    %v211 = vunpack.c.0.s8 %v210
    %v212 = vlaneseq
    %v213 = vshrl.u32 %v212, 7
    %v214 = vsub.s32 %v211, %v213
    %v215 = vrot.slane %v207, %v214
    %v217 = vunpack.c.l.s4 1934713408
    %v218 = vunpack.c.0.s8 %v217
    %v219 = vlaneseq
    %v220 = vshrl.u32 %v219, 7
    %v221 = vsub.s32 %v218, %v220
    %v222 = vrot.slane %v208, %v221
    %v223 = vcombine.high %v199, 0.0
    %v224 = vcombine.high %v206, 0.0
    %v225 = vcombine.high %v215, 0.0
    %v226 = vcombine.high %v222, 0.0
    %v227 = vcombine.low %v48, %v112
    %v228 = vcombine.high %v48, %v112
    %v230 = vunpack.c.l.s4 1983009808
    %v231 = vunpack.c.0.s8 %v230
    %v232 = vlaneseq
    %v233 = vshrl.u32 %v232, 7
    %v234 = vsub.s32 %v231, %v233
    %v235 = vrot.slane %v227, %v234
    %v237 = vunpack.c.l.s4 1983009808
    %v238 = vunpack.c.0.s8 %v237
    %v239 = vlaneseq
    %v240 = vshrl.u32 %v239, 7
    %v241 = vsub.s32 %v238, %v240
    %v242 = vrot.slane %v228, %v241
    %v243 = vcombine.low %v80, %v144
    %v244 = vcombine.high %v80, %v144
    %v246 = vunpack.c.l.s4 1983009808
    %v247 = vunpack.c.0.s8 %v246
    %v248 = vlaneseq
    %v249 = vshrl.u32 %v248, 7
    %v250 = vsub.s32 %v247, %v249
    %v251 = vrot.slane %v243, %v250
    %v253 = vunpack.c.l.s4 1983009808
    %v254 = vunpack.c.0.s8 %v253
    %v255 = vlaneseq
    %v256 = vshrl.u32 %v255, 7
    %v257 = vsub.s32 %v254, %v256
    %v258 = vrot.slane %v244, %v257
    %v259 = vcombine.low %v235, %v251
    %v260 = vcombine.high %v235, %v251
    %v262 = vunpack.c.l.s4 1934713408
    %v263 = vunpack.c.0.s8 %v262
    %v264 = vlaneseq
    %v265 = vshrl.u32 %v264, 7
    %v266 = vsub.s32 %v263, %v265
    %v267 = vrot.slane %v259, %v266
    %v269 = vunpack.c.l.s4 1934713408
    %v270 = vunpack.c.0.s8 %v269
    %v271 = vlaneseq
    %v272 = vshrl.u32 %v271, 7
    %v273 = vsub.s32 %v270, %v272
    %v274 = vrot.slane %v260, %v273
    %v275 = vcombine.low %v242, %v258
    %v276 = vcombine.high %v242, %v258
    %v278 = vunpack.c.l.s4 1934713408
    %v279 = vunpack.c.0.s8 %v278
    %v280 = vlaneseq
    %v281 = vshrl.u32 %v280, 7
    %v282 = vsub.s32 %v279, %v281
    %v283 = vrot.slane %v275, %v282
    %v285 = vunpack.c.l.s4 1934713408
    %v286 = vunpack.c.0.s8 %v285
    %v287 = vlaneseq
    %v288 = vshrl.u32 %v287, 7
    %v289 = vsub.s32 %v286, %v288
    %v290 = vrot.slane %v276, %v289
    %v291 = vcombine.high %v267, 0.0
    %v292 = vcombine.high %v274, 0.0
    %v293 = vcombine.high %v283, 0.0
    %v294 = vcombine.high %v290, 0.0
    %295 = vxpose.xlu0.b32.start [1/16] %v199, 128
    %296 = vxpose.xlu0.b32.cont [2/16] 0.0, 128
    %297 = vxpose.xlu0.b32.cont [3/16] 0.0, 128
    %298 = vxpose.xlu0.b32.cont [4/16] 0.0, 128
    %299 = vxpose.xlu0.b32.cont [5/16] 0.0, 128
    %300 = vxpose.xlu0.b32.cont [6/16] 0.0, 128
    %301 = vxpose.xlu0.b32.cont [7/16] 0.0, 128
    %302 = vxpose.xlu0.b32.cont [8/16] 0.0, 128
    %303 = vxpose.xlu0.b32.cont [9/16] 0.0, 128
    %304 = vxpose.xlu0.b32.cont [10/16] 0.0, 128
    %305 = vxpose.xlu0.b32.cont [11/16] 0.0, 128
    %306 = vxpose.xlu0.b32.cont [12/16] 0.0, 128
    %307 = vxpose.xlu0.b32.cont [13/16] 0.0, 128
    %308 = vxpose.xlu0.b32.cont [14/16] 0.0, 128
    %309 = vxpose.xlu0.b32.cont [15/16] 0.0, 128
    %310 = vxpose.xlu0.b32.end [16/16] 0.0, 128
    %v311 = vpop.trf.xlu0
    %v312 = vpop.trf.xlu0
    %v313 = vpop.trf.xlu0
    %v314 = vpop.trf.xlu0
    %v315 = vpop.trf.xlu0
    %v316 = vpop.trf.xlu0
    %v317 = vpop.trf.xlu0
    %v318 = vpop.trf.xlu0
    %v319 = vpop.trf.xlu0
    %v320 = vpop.trf.xlu0
    %v321 = vpop.trf.xlu0
    %v322 = vpop.trf.xlu0
    %v323 = vpop.trf.xlu0
    %v324 = vpop.trf.xlu0
    %v325 = vpop.trf.xlu0
    %v326 = vpop.trf.xlu0
    %327 = vxpose.xlu0.b32.start [1/16] %v223, 128
    %328 = vxpose.xlu0.b32.cont [2/16] 0.0, 128
    %329 = vxpose.xlu0.b32.cont [3/16] 0.0, 128
    %330 = vxpose.xlu0.b32.cont [4/16] 0.0, 128
    %331 = vxpose.xlu0.b32.cont [5/16] 0.0, 128
    %332 = vxpose.xlu0.b32.cont [6/16] 0.0, 128
    %333 = vxpose.xlu0.b32.cont [7/16] 0.0, 128
    %334 = vxpose.xlu0.b32.cont [8/16] 0.0, 128
    %335 = vxpose.xlu0.b32.cont [9/16] 0.0, 128
    %336 = vxpose.xlu0.b32.cont [10/16] 0.0, 128
    %337 = vxpose.xlu0.b32.cont [11/16] 0.0, 128
    %338 = vxpose.xlu0.b32.cont [12/16] 0.0, 128
    %339 = vxpose.xlu0.b32.cont [13/16] 0.0, 128
    %340 = vxpose.xlu0.b32.cont [14/16] 0.0, 128
    %341 = vxpose.xlu0.b32.cont [15/16] 0.0, 128
    %342 = vxpose.xlu0.b32.end [16/16] 0.0, 128
    %v343 = vpop.trf.xlu0
    %v344 = vpop.trf.xlu0
    %v345 = vpop.trf.xlu0
    %v346 = vpop.trf.xlu0
    %v347 = vpop.trf.xlu0
    %v348 = vpop.trf.xlu0
    %v349 = vpop.trf.xlu0
    %v350 = vpop.trf.xlu0
    %v351 = vpop.trf.xlu0
    %v352 = vpop.trf.xlu0
    %v353 = vpop.trf.xlu0
    %v354 = vpop.trf.xlu0
    %v355 = vpop.trf.xlu0
    %v356 = vpop.trf.xlu0
    %v357 = vpop.trf.xlu0
    %v358 = vpop.trf.xlu0
    %359 = vxpose.xlu0.b32.start [1/16] %v206, 128
    %360 = vxpose.xlu0.b32.cont [2/16] 0.0, 128
    %361 = vxpose.xlu0.b32.cont [3/16] 0.0, 128
    %362 = vxpose.xlu0.b32.cont [4/16] 0.0, 128
    %363 = vxpose.xlu0.b32.cont [5/16] 0.0, 128
    %364 = vxpose.xlu0.b32.cont [6/16] 0.0, 128
    %365 = vxpose.xlu0.b32.cont [7/16] 0.0, 128
    %366 = vxpose.xlu0.b32.cont [8/16] 0.0, 128
    %367 = vxpose.xlu0.b32.cont [9/16] 0.0, 128
    %368 = vxpose.xlu0.b32.cont [10/16] 0.0, 128
    %369 = vxpose.xlu0.b32.cont [11/16] 0.0, 128
    %370 = vxpose.xlu0.b32.cont [12/16] 0.0, 128
    %371 = vxpose.xlu0.b32.cont [13/16] 0.0, 128
    %372 = vxpose.xlu0.b32.cont [14/16] 0.0, 128
    %373 = vxpose.xlu0.b32.cont [15/16] 0.0, 128
    %374 = vxpose.xlu0.b32.end [16/16] 0.0, 128
    %v375 = vpop.trf.xlu0
    %v376 = vpop.trf.xlu0
    %v377 = vpop.trf.xlu0
    %v378 = vpop.trf.xlu0
    %v379 = vpop.trf.xlu0
    %v380 = vpop.trf.xlu0
    %v381 = vpop.trf.xlu0
    %v382 = vpop.trf.xlu0
    %v383 = vpop.trf.xlu0
    %v384 = vpop.trf.xlu0
    %v385 = vpop.trf.xlu0
    %v386 = vpop.trf.xlu0
    %v387 = vpop.trf.xlu0
    %v388 = vpop.trf.xlu0
    %v389 = vpop.trf.xlu0
    %v390 = vpop.trf.xlu0
    %391 = vxpose.xlu0.b32.start [1/16] %v224, 128
    %392 = vxpose.xlu0.b32.cont [2/16] 0.0, 128
    %393 = vxpose.xlu0.b32.cont [3/16] 0.0, 128
    %394 = vxpose.xlu0.b32.cont [4/16] 0.0, 128
    %395 = vxpose.xlu0.b32.cont [5/16] 0.0, 128
    %396 = vxpose.xlu0.b32.cont [6/16] 0.0, 128
    %397 = vxpose.xlu0.b32.cont [7/16] 0.0, 128
    %398 = vxpose.xlu0.b32.cont [8/16] 0.0, 128
    %399 = vxpose.xlu0.b32.cont [9/16] 0.0, 128
    %400 = vxpose.xlu0.b32.cont [10/16] 0.0, 128
    %401 = vxpose.xlu0.b32.cont [11/16] 0.0, 128
    %402 = vxpose.xlu0.b32.cont [12/16] 0.0, 128
    %403 = vxpose.xlu0.b32.cont [13/16] 0.0, 128
    %404 = vxpose.xlu0.b32.cont [14/16] 0.0, 128
    %405 = vxpose.xlu0.b32.cont [15/16] 0.0, 128
    %406 = vxpose.xlu0.b32.end [16/16] 0.0, 128
    %v407 = vpop.trf.xlu0
    %v408 = vpop.trf.xlu0
    %v409 = vpop.trf.xlu0
    %v410 = vpop.trf.xlu0
    %v411 = vpop.trf.xlu0
    %v412 = vpop.trf.xlu0
    %v413 = vpop.trf.xlu0
    %v414 = vpop.trf.xlu0
    %v415 = vpop.trf.xlu0
    %v416 = vpop.trf.xlu0
    %v417 = vpop.trf.xlu0
    %v418 = vpop.trf.xlu0
    %v419 = vpop.trf.xlu0
    %v420 = vpop.trf.xlu0
    %v421 = vpop.trf.xlu0
    %v422 = vpop.trf.xlu0
    %423 = vxpose.xlu0.b32.start [1/16] %v215, 128
    %424 = vxpose.xlu0.b32.cont [2/16] 0.0, 128
    %425 = vxpose.xlu0.b32.cont [3/16] 0.0, 128
    %426 = vxpose.xlu0.b32.cont [4/16] 0.0, 128
    %427 = vxpose.xlu0.b32.cont [5/16] 0.0, 128
    %428 = vxpose.xlu0.b32.cont [6/16] 0.0, 128
    %429 = vxpose.xlu0.b32.cont [7/16] 0.0, 128
    %430 = vxpose.xlu0.b32.cont [8/16] 0.0, 128
    %431 = vxpose.xlu0.b32.cont [9/16] 0.0, 128
    %432 = vxpose.xlu0.b32.cont [10/16] 0.0, 128
    %433 = vxpose.xlu0.b32.cont [11/16] 0.0, 128
    %434 = vxpose.xlu0.b32.cont [12/16] 0.0, 128
    %435 = vxpose.xlu0.b32.cont [13/16] 0.0, 128
    %436 = vxpose.xlu0.b32.cont [14/16] 0.0, 128
    %437 = vxpose.xlu0.b32.cont [15/16] 0.0, 128
    %438 = vxpose.xlu0.b32.end [16/16] 0.0, 128
    %v439 = vpop.trf.xlu0
    %v440 = vpop.trf.xlu0
    %v441 = vpop.trf.xlu0
    %v442 = vpop.trf.xlu0
    %v443 = vpop.trf.xlu0
    %v444 = vpop.trf.xlu0
    %v445 = vpop.trf.xlu0
    %v446 = vpop.trf.xlu0
    %v447 = vpop.trf.xlu0
    %v448 = vpop.trf.xlu0
    %v449 = vpop.trf.xlu0
    %v450 = vpop.trf.xlu0
    %v451 = vpop.trf.xlu0
    %v452 = vpop.trf.xlu0
    %v453 = vpop.trf.xlu0
    %v454 = vpop.trf.xlu0
    %455 = vxpose.xlu0.b32.start [1/16] %v225, 128
    %456 = vxpose.xlu0.b32.cont [2/16] 0.0, 128
    %457 = vxpose.xlu0.b32.cont [3/16] 0.0, 128
    %458 = vxpose.xlu0.b32.cont [4/16] 0.0, 128
    %459 = vxpose.xlu0.b32.cont [5/16] 0.0, 128
    %460 = vxpose.xlu0.b32.cont [6/16] 0.0, 128
    %461 = vxpose.xlu0.b32.cont [7/16] 0.0, 128
    %462 = vxpose.xlu0.b32.cont [8/16] 0.0, 128
    %463 = vxpose.xlu0.b32.cont [9/16] 0.0, 128
    %464 = vxpose.xlu0.b32.cont [10/16] 0.0, 128
    %465 = vxpose.xlu0.b32.cont [11/16] 0.0, 128
    %466 = vxpose.xlu0.b32.cont [12/16] 0.0, 128
    %467 = vxpose.xlu0.b32.cont [13/16] 0.0, 128
    %468 = vxpose.xlu0.b32.cont [14/16] 0.0, 128
    %469 = vxpose.xlu0.b32.cont [15/16] 0.0, 128
    %470 = vxpose.xlu0.b32.end [16/16] 0.0, 128
    %v471 = vpop.trf.xlu0
    %v472 = vpop.trf.xlu0
    %v473 = vpop.trf.xlu0
    %v474 = vpop.trf.xlu0
    %v475 = vpop.trf.xlu0
    %v476 = vpop.trf.xlu0
    %v477 = vpop.trf.xlu0
    %v478 = vpop.trf.xlu0
    %v479 = vpop.trf.xlu0
    %v480 = vpop.trf.xlu0
    %v481 = vpop.trf.xlu0
    %v482 = vpop.trf.xlu0
    %v483 = vpop.trf.xlu0
    %v484 = vpop.trf.xlu0
    %v485 = vpop.trf.xlu0
    %v486 = vpop.trf.xlu0
    %487 = vxpose.xlu0.b32.start [1/16] %v222, 128
    %488 = vxpose.xlu0.b32.cont [2/16] 0.0, 128
    %489 = vxpose.xlu0.b32.cont [3/16] 0.0, 128
    %490 = vxpose.xlu0.b32.cont [4/16] 0.0, 128
    %491 = vxpose.xlu0.b32.cont [5/16] 0.0, 128
    %492 = vxpose.xlu0.b32.cont [6/16] 0.0, 128
    %493 = vxpose.xlu0.b32.cont [7/16] 0.0, 128
    %494 = vxpose.xlu0.b32.cont [8/16] 0.0, 128
    %495 = vxpose.xlu0.b32.cont [9/16] 0.0, 128
    %496 = vxpose.xlu0.b32.cont [10/16] 0.0, 128
    %497 = vxpose.xlu0.b32.cont [11/16] 0.0, 128
    %498 = vxpose.xlu0.b32.cont [12/16] 0.0, 128
    %499 = vxpose.xlu0.b32.cont [13/16] 0.0, 128
    %500 = vxpose.xlu0.b32.cont [14/16] 0.0, 128
    %501 = vxpose.xlu0.b32.cont [15/16] 0.0, 128
    %502 = vxpose.xlu0.b32.end [16/16] 0.0, 128
    %v503 = vpop.trf.xlu0
    %v504 = vpop.trf.xlu0
    %v505 = vpop.trf.xlu0
    %v506 = vpop.trf.xlu0
    %v507 = vpop.trf.xlu0
    %v508 = vpop.trf.xlu0
    %v509 = vpop.trf.xlu0
    %v510 = vpop.trf.xlu0
    %v511 = vpop.trf.xlu0
    %v512 = vpop.trf.xlu0
    %v513 = vpop.trf.xlu0
    %v514 = vpop.trf.xlu0
    %v515 = vpop.trf.xlu0
    %v516 = vpop.trf.xlu0
    %v517 = vpop.trf.xlu0
    %v518 = vpop.trf.xlu0
    %519 = vxpose.xlu0.b32.start [1/16] %v226, 128
    %520 = vxpose.xlu0.b32.cont [2/16] 0.0, 128
    %521 = vxpose.xlu0.b32.cont [3/16] 0.0, 128
    %522 = vxpose.xlu0.b32.cont [4/16] 0.0, 128
    %523 = vxpose.xlu0.b32.cont [5/16] 0.0, 128
    %524 = vxpose.xlu0.b32.cont [6/16] 0.0, 128
    %525 = vxpose.xlu0.b32.cont [7/16] 0.0, 128
    %526 = vxpose.xlu0.b32.cont [8/16] 0.0, 128
    %527 = vxpose.xlu0.b32.cont [9/16] 0.0, 128
    %528 = vxpose.xlu0.b32.cont [10/16] 0.0, 128
    %529 = vxpose.xlu0.b32.cont [11/16] 0.0, 128
    %530 = vxpose.xlu0.b32.cont [12/16] 0.0, 128
    %531 = vxpose.xlu0.b32.cont [13/16] 0.0, 128
    %532 = vxpose.xlu0.b32.cont [14/16] 0.0, 128
    %533 = vxpose.xlu0.b32.cont [15/16] 0.0, 128
    %534 = vxpose.xlu0.b32.end [16/16] 0.0, 128
    %v535 = vpop.trf.xlu0
    %v536 = vpop.trf.xlu0
    %v537 = vpop.trf.xlu0
    %v538 = vpop.trf.xlu0
    %v539 = vpop.trf.xlu0
    %v540 = vpop.trf.xlu0
    %v541 = vpop.trf.xlu0
    %v542 = vpop.trf.xlu0
    %v543 = vpop.trf.xlu0
    %v544 = vpop.trf.xlu0
    %v545 = vpop.trf.xlu0
    %v546 = vpop.trf.xlu0
    %v547 = vpop.trf.xlu0
    %v548 = vpop.trf.xlu0
    %v549 = vpop.trf.xlu0
    %v550 = vpop.trf.xlu0
    %551 = vxpose.xlu0.b32.start [1/16] %v267, 128
    %552 = vxpose.xlu0.b32.cont [2/16] 0.0, 128
    %553 = vxpose.xlu0.b32.cont [3/16] 0.0, 128
    %554 = vxpose.xlu0.b32.cont [4/16] 0.0, 128
    %555 = vxpose.xlu0.b32.cont [5/16] 0.0, 128
    %556 = vxpose.xlu0.b32.cont [6/16] 0.0, 128
    %557 = vxpose.xlu0.b32.cont [7/16] 0.0, 128
    %558 = vxpose.xlu0.b32.cont [8/16] 0.0, 128
    %559 = vxpose.xlu0.b32.cont [9/16] 0.0, 128
    %560 = vxpose.xlu0.b32.cont [10/16] 0.0, 128
    %561 = vxpose.xlu0.b32.cont [11/16] 0.0, 128
    %562 = vxpose.xlu0.b32.cont [12/16] 0.0, 128
    %563 = vxpose.xlu0.b32.cont [13/16] 0.0, 128
    %564 = vxpose.xlu0.b32.cont [14/16] 0.0, 128
    %565 = vxpose.xlu0.b32.cont [15/16] 0.0, 128
    %566 = vxpose.xlu0.b32.end [16/16] 0.0, 128
    %v567 = vpop.trf.xlu0
    %v568 = vpop.trf.xlu0
    %v569 = vpop.trf.xlu0
    %v570 = vpop.trf.xlu0
    %v571 = vpop.trf.xlu0
    %v572 = vpop.trf.xlu0
    %v573 = vpop.trf.xlu0
    %v574 = vpop.trf.xlu0
    %v575 = vpop.trf.xlu0
    %v576 = vpop.trf.xlu0
    %v577 = vpop.trf.xlu0
    %v578 = vpop.trf.xlu0
    %v579 = vpop.trf.xlu0
    %v580 = vpop.trf.xlu0
    %v581 = vpop.trf.xlu0
    %v582 = vpop.trf.xlu0
    %583 = vxpose.xlu0.b32.start [1/16] %v291, 128
    %584 = vxpose.xlu0.b32.cont [2/16] 0.0, 128
    %585 = vxpose.xlu0.b32.cont [3/16] 0.0, 128
    %586 = vxpose.xlu0.b32.cont [4/16] 0.0, 128
    %587 = vxpose.xlu0.b32.cont [5/16] 0.0, 128
    %588 = vxpose.xlu0.b32.cont [6/16] 0.0, 128
    %589 = vxpose.xlu0.b32.cont [7/16] 0.0, 128
    %590 = vxpose.xlu0.b32.cont [8/16] 0.0, 128
    %591 = vxpose.xlu0.b32.cont [9/16] 0.0, 128
    %592 = vxpose.xlu0.b32.cont [10/16] 0.0, 128
    %593 = vxpose.xlu0.b32.cont [11/16] 0.0, 128
    %594 = vxpose.xlu0.b32.cont [12/16] 0.0, 128
    %595 = vxpose.xlu0.b32.cont [13/16] 0.0, 128
    %596 = vxpose.xlu0.b32.cont [14/16] 0.0, 128
    %597 = vxpose.xlu0.b32.cont [15/16] 0.0, 128
    %598 = vxpose.xlu0.b32.end [16/16] 0.0, 128
    %v599 = vpop.trf.xlu0
    %v600 = vpop.trf.xlu0
    %v601 = vpop.trf.xlu0
    %v602 = vpop.trf.xlu0
    %v603 = vpop.trf.xlu0
    %v604 = vpop.trf.xlu0
    %v605 = vpop.trf.xlu0
    %v606 = vpop.trf.xlu0
    %v607 = vpop.trf.xlu0
    %v608 = vpop.trf.xlu0
    %v609 = vpop.trf.xlu0
    %v610 = vpop.trf.xlu0
    %v611 = vpop.trf.xlu0
    %v612 = vpop.trf.xlu0
    %v613 = vpop.trf.xlu0
    %v614 = vpop.trf.xlu0
    %615 = vxpose.xlu0.b32.start [1/16] %v274, 128
    %616 = vxpose.xlu0.b32.cont [2/16] 0.0, 128
    %617 = vxpose.xlu0.b32.cont [3/16] 0.0, 128
    %618 = vxpose.xlu0.b32.cont [4/16] 0.0, 128
    %619 = vxpose.xlu0.b32.cont [5/16] 0.0, 128
    %620 = vxpose.xlu0.b32.cont [6/16] 0.0, 128
    %621 = vxpose.xlu0.b32.cont [7/16] 0.0, 128
    %622 = vxpose.xlu0.b32.cont [8/16] 0.0, 128
    %623 = vxpose.xlu0.b32.cont [9/16] 0.0, 128
    %624 = vxpose.xlu0.b32.cont [10/16] 0.0, 128
    %625 = vxpose.xlu0.b32.cont [11/16] 0.0, 128
    %626 = vxpose.xlu0.b32.cont [12/16] 0.0, 128
    %627 = vxpose.xlu0.b32.cont [13/16] 0.0, 128
    %628 = vxpose.xlu0.b32.cont [14/16] 0.0, 128
    %629 = vxpose.xlu0.b32.cont [15/16] 0.0, 128
    %630 = vxpose.xlu0.b32.end [16/16] 0.0, 128
    %v631 = vpop.trf.xlu0
    %v632 = vpop.trf.xlu0
    %v633 = vpop.trf.xlu0
    %v634 = vpop.trf.xlu0
    %v635 = vpop.trf.xlu0
    %v636 = vpop.trf.xlu0
    %v637 = vpop.trf.xlu0
    %v638 = vpop.trf.xlu0
    %v639 = vpop.trf.xlu0
    %v640 = vpop.trf.xlu0
    %v641 = vpop.trf.xlu0
    %v642 = vpop.trf.xlu0
    %v643 = vpop.trf.xlu0
    %v644 = vpop.trf.xlu0
    %v645 = vpop.trf.xlu0
    %v646 = vpop.trf.xlu0
    %647 = vxpose.xlu0.b32.start [1/16] %v292, 128
    %648 = vxpose.xlu0.b32.cont [2/16] 0.0, 128
    %649 = vxpose.xlu0.b32.cont [3/16] 0.0, 128
    %650 = vxpose.xlu0.b32.cont [4/16] 0.0, 128
    %651 = vxpose.xlu0.b32.cont [5/16] 0.0, 128
    %652 = vxpose.xlu0.b32.cont [6/16] 0.0, 128
    %653 = vxpose.xlu0.b32.cont [7/16] 0.0, 128
    %654 = vxpose.xlu0.b32.cont [8/16] 0.0, 128
    %655 = vxpose.xlu0.b32.cont [9/16] 0.0, 128
    %656 = vxpose.xlu0.b32.cont [10/16] 0.0, 128
    %657 = vxpose.xlu0.b32.cont [11/16] 0.0, 128
    %658 = vxpose.xlu0.b32.cont [12/16] 0.0, 128
    %659 = vxpose.xlu0.b32.cont [13/16] 0.0, 128
    %660 = vxpose.xlu0.b32.cont [14/16] 0.0, 128
    %661 = vxpose.xlu0.b32.cont [15/16] 0.0, 128
    %662 = vxpose.xlu0.b32.end [16/16] 0.0, 128
    %v663 = vpop.trf.xlu0
    %v664 = vpop.trf.xlu0
    %v665 = vpop.trf.xlu0
    %v666 = vpop.trf.xlu0
    %v667 = vpop.trf.xlu0
    %v668 = vpop.trf.xlu0
    %v669 = vpop.trf.xlu0
    %v670 = vpop.trf.xlu0
    %v671 = vpop.trf.xlu0
    %v672 = vpop.trf.xlu0
    %v673 = vpop.trf.xlu0
    %v674 = vpop.trf.xlu0
    %v675 = vpop.trf.xlu0
    %v676 = vpop.trf.xlu0
    %v677 = vpop.trf.xlu0
    %v678 = vpop.trf.xlu0
    %679 = vxpose.xlu0.b32.start [1/16] %v283, 128
    %680 = vxpose.xlu0.b32.cont [2/16] 0.0, 128
    %681 = vxpose.xlu0.b32.cont [3/16] 0.0, 128
    %682 = vxpose.xlu0.b32.cont [4/16] 0.0, 128
    %683 = vxpose.xlu0.b32.cont [5/16] 0.0, 128
    %684 = vxpose.xlu0.b32.cont [6/16] 0.0, 128
    %685 = vxpose.xlu0.b32.cont [7/16] 0.0, 128
    %686 = vxpose.xlu0.b32.cont [8/16] 0.0, 128
    %687 = vxpose.xlu0.b32.cont [9/16] 0.0, 128
    %688 = vxpose.xlu0.b32.cont [10/16] 0.0, 128
    %689 = vxpose.xlu0.b32.cont [11/16] 0.0, 128
    %690 = vxpose.xlu0.b32.cont [12/16] 0.0, 128
    %691 = vxpose.xlu0.b32.cont [13/16] 0.0, 128
    %692 = vxpose.xlu0.b32.cont [14/16] 0.0, 128
    %693 = vxpose.xlu0.b32.cont [15/16] 0.0, 128
    %694 = vxpose.xlu0.b32.end [16/16] 0.0, 128
    %v695 = vpop.trf.xlu0
    %v696 = vpop.trf.xlu0
    %v697 = vpop.trf.xlu0
    %v698 = vpop.trf.xlu0
    %v699 = vpop.trf.xlu0
    %v700 = vpop.trf.xlu0
    %v701 = vpop.trf.xlu0
    %v702 = vpop.trf.xlu0
    %v703 = vpop.trf.xlu0
    %v704 = vpop.trf.xlu0
    %v705 = vpop.trf.xlu0
    %v706 = vpop.trf.xlu0
    %v707 = vpop.trf.xlu0
    %v708 = vpop.trf.xlu0
    %v709 = vpop.trf.xlu0
    %v710 = vpop.trf.xlu0
    %711 = vxpose.xlu0.b32.start [1/16] %v293, 128
    %712 = vxpose.xlu0.b32.cont [2/16] 0.0, 128
    %713 = vxpose.xlu0.b32.cont [3/16] 0.0, 128
    %714 = vxpose.xlu0.b32.cont [4/16] 0.0, 128
    %715 = vxpose.xlu0.b32.cont [5/16] 0.0, 128
    %716 = vxpose.xlu0.b32.cont [6/16] 0.0, 128
    %717 = vxpose.xlu0.b32.cont [7/16] 0.0, 128
    %718 = vxpose.xlu0.b32.cont [8/16] 0.0, 128
    %719 = vxpose.xlu0.b32.cont [9/16] 0.0, 128
    %720 = vxpose.xlu0.b32.cont [10/16] 0.0, 128
    %721 = vxpose.xlu0.b32.cont [11/16] 0.0, 128
    %722 = vxpose.xlu0.b32.cont [12/16] 0.0, 128
    %723 = vxpose.xlu0.b32.cont [13/16] 0.0, 128
    %724 = vxpose.xlu0.b32.cont [14/16] 0.0, 128
    %725 = vxpose.xlu0.b32.cont [15/16] 0.0, 128
    %726 = vxpose.xlu0.b32.end [16/16] 0.0, 128
    %v727 = vpop.trf.xlu0
    %v728 = vpop.trf.xlu0
    %v729 = vpop.trf.xlu0
    %v730 = vpop.trf.xlu0
    %v731 = vpop.trf.xlu0
    %v732 = vpop.trf.xlu0
    %v733 = vpop.trf.xlu0
    %v734 = vpop.trf.xlu0
    %v735 = vpop.trf.xlu0
    %v736 = vpop.trf.xlu0
    %v737 = vpop.trf.xlu0
    %v738 = vpop.trf.xlu0
    %v739 = vpop.trf.xlu0
    %v740 = vpop.trf.xlu0
    %v741 = vpop.trf.xlu0
    %v742 = vpop.trf.xlu0
    %743 = vxpose.xlu0.b32.start [1/16] %v290, 128
    %744 = vxpose.xlu0.b32.cont [2/16] 0.0, 128
    %745 = vxpose.xlu0.b32.cont [3/16] 0.0, 128
    %746 = vxpose.xlu0.b32.cont [4/16] 0.0, 128
    %747 = vxpose.xlu0.b32.cont [5/16] 0.0, 128
    %748 = vxpose.xlu0.b32.cont [6/16] 0.0, 128
    %749 = vxpose.xlu0.b32.cont [7/16] 0.0, 128
    %750 = vxpose.xlu0.b32.cont [8/16] 0.0, 128
    %751 = vxpose.xlu0.b32.cont [9/16] 0.0, 128
    %752 = vxpose.xlu0.b32.cont [10/16] 0.0, 128
    %753 = vxpose.xlu0.b32.cont [11/16] 0.0, 128
    %754 = vxpose.xlu0.b32.cont [12/16] 0.0, 128
    %755 = vxpose.xlu0.b32.cont [13/16] 0.0, 128
    %756 = vxpose.xlu0.b32.cont [14/16] 0.0, 128
    %757 = vxpose.xlu0.b32.cont [15/16] 0.0, 128
    %758 = vxpose.xlu0.b32.end [16/16] 0.0, 128
    %v759 = vpop.trf.xlu0
    %v760 = vpop.trf.xlu0
    %v761 = vpop.trf.xlu0
    %v762 = vpop.trf.xlu0
    %v763 = vpop.trf.xlu0
    %v764 = vpop.trf.xlu0
    %v765 = vpop.trf.xlu0
    %v766 = vpop.trf.xlu0
    %v767 = vpop.trf.xlu0
    %v768 = vpop.trf.xlu0
    %v769 = vpop.trf.xlu0
    %v770 = vpop.trf.xlu0
    %v771 = vpop.trf.xlu0
    %v772 = vpop.trf.xlu0
    %v773 = vpop.trf.xlu0
    %v774 = vpop.trf.xlu0
    %775 = vxpose.xlu0.b32.start [1/16] %v294, 128
    %776 = vxpose.xlu0.b32.cont [2/16] 0.0, 128
    %777 = vxpose.xlu0.b32.cont [3/16] 0.0, 128
    %778 = vxpose.xlu0.b32.cont [4/16] 0.0, 128
    %779 = vxpose.xlu0.b32.cont [5/16] 0.0, 128
    %780 = vxpose.xlu0.b32.cont [6/16] 0.0, 128
    %781 = vxpose.xlu0.b32.cont [7/16] 0.0, 128
    %782 = vxpose.xlu0.b32.cont [8/16] 0.0, 128
    %783 = vxpose.xlu0.b32.cont [9/16] 0.0, 128
    %784 = vxpose.xlu0.b32.cont [10/16] 0.0, 128
    %785 = vxpose.xlu0.b32.cont [11/16] 0.0, 128
    %786 = vxpose.xlu0.b32.cont [12/16] 0.0, 128
    %787 = vxpose.xlu0.b32.cont [13/16] 0.0, 128
    %788 = vxpose.xlu0.b32.cont [14/16] 0.0, 128
    %789 = vxpose.xlu0.b32.cont [15/16] 0.0, 128
    %790 = vxpose.xlu0.b32.end [16/16] 0.0, 128
    %v791 = vpop.trf.xlu0
    %v792 = vpop.trf.xlu0
    %v793 = vpop.trf.xlu0
    %v794 = vpop.trf.xlu0
    %v795 = vpop.trf.xlu0
    %v796 = vpop.trf.xlu0
    %v797 = vpop.trf.xlu0
    %v798 = vpop.trf.xlu0
    %v799 = vpop.trf.xlu0
    %v800 = vpop.trf.xlu0
    %v801 = vpop.trf.xlu0
    %v802 = vpop.trf.xlu0
    %v803 = vpop.trf.xlu0
    %v804 = vpop.trf.xlu0
    %v805 = vpop.trf.xlu0
    %v806 = vpop.trf.xlu0
    %v807 = vcombine.low %v311, %v375
    %v808 = vcombine.high %v311, %v375
    %v810 = vunpack.c.l.s4 1983009808
    %v811 = vunpack.c.0.s8 %v810
    %v812 = vlaneseq
    %v813 = vshrl.u32 %v812, 7
    %v814 = vsub.s32 %v811, %v813
    %v815 = vrot.slane %v807, %v814
    %v817 = vunpack.c.l.s4 1983009808
    %v818 = vunpack.c.0.s8 %v817
    %v819 = vlaneseq
    %v820 = vshrl.u32 %v819, 7
    %v821 = vsub.s32 %v818, %v820
    %v822 = vrot.slane %v808, %v821
    %v823 = vcombine.low %v343, %v407
    %v824 = vcombine.high %v343, %v407
    %v826 = vunpack.c.l.s4 1983009808
    %v827 = vunpack.c.0.s8 %v826
    %v828 = vlaneseq
    %v829 = vshrl.u32 %v828, 7
    %v830 = vsub.s32 %v827, %v829
    %v831 = vrot.slane %v823, %v830
    %v833 = vunpack.c.l.s4 1983009808
    %v834 = vunpack.c.0.s8 %v833
    %v835 = vlaneseq
    %v836 = vshrl.u32 %v835, 7
    %v837 = vsub.s32 %v834, %v836
    %v838 = vrot.slane %v824, %v837
    %v839 = vcombine.low %v439, %v503
    %v840 = vcombine.high %v439, %v503
    %v842 = vunpack.c.l.s4 1983009808
    %v843 = vunpack.c.0.s8 %v842
    %v844 = vlaneseq
    %v845 = vshrl.u32 %v844, 7
    %v846 = vsub.s32 %v843, %v845
    %v847 = vrot.slane %v839, %v846
    %v849 = vunpack.c.l.s4 1983009808
    %v850 = vunpack.c.0.s8 %v849
    %v851 = vlaneseq
    %v852 = vshrl.u32 %v851, 7
    %v853 = vsub.s32 %v850, %v852
    %v854 = vrot.slane %v840, %v853
    %v855 = vcombine.low %v471, %v535
    %v856 = vcombine.high %v471, %v535
    %v858 = vunpack.c.l.s4 1983009808
    %v859 = vunpack.c.0.s8 %v858
    %v860 = vlaneseq
    %v861 = vshrl.u32 %v860, 7
    %v862 = vsub.s32 %v859, %v861
    %v863 = vrot.slane %v855, %v862
    %v865 = vunpack.c.l.s4 1983009808
    %v866 = vunpack.c.0.s8 %v865
    %v867 = vlaneseq
    %v868 = vshrl.u32 %v867, 7
    %v869 = vsub.s32 %v866, %v868
    %v870 = vrot.slane %v856, %v869
    %v871 = vcombine.low %v815, %v831
    %v872 = vcombine.high %v815, %v831
    %v874 = vunpack.c.l.s4 1934713408
    %v875 = vunpack.c.0.s8 %v874
    %v876 = vlaneseq
    %v877 = vshrl.u32 %v876, 7
    %v878 = vsub.s32 %v875, %v877
    %v879 = vrot.slane %v871, %v878
    %v881 = vunpack.c.l.s4 1934713408
    %v882 = vunpack.c.0.s8 %v881
    %v883 = vlaneseq
    %v884 = vshrl.u32 %v883, 7
    %v885 = vsub.s32 %v882, %v884
    %v886 = vrot.slane %v872, %v885
    %v887 = vcombine.low %v822, %v838
    %v888 = vcombine.high %v822, %v838
    %v890 = vunpack.c.l.s4 1934713408
    %v891 = vunpack.c.0.s8 %v890
    %v892 = vlaneseq
    %v893 = vshrl.u32 %v892, 7
    %v894 = vsub.s32 %v891, %v893
    %v895 = vrot.slane %v887, %v894
    %v897 = vunpack.c.l.s4 1934713408
    %v898 = vunpack.c.0.s8 %v897
    %v899 = vlaneseq
    %v900 = vshrl.u32 %v899, 7
    %v901 = vsub.s32 %v898, %v900
    %v902 = vrot.slane %v888, %v901
    %v903 = vcombine.low %v847, %v863
    %v904 = vcombine.high %v847, %v863
    %v906 = vunpack.c.l.s4 1934713408
    %v907 = vunpack.c.0.s8 %v906
    %v908 = vlaneseq
    %v909 = vshrl.u32 %v908, 7
    %v910 = vsub.s32 %v907, %v909
    %v911 = vrot.slane %v903, %v910
    %v913 = vunpack.c.l.s4 1934713408
    %v914 = vunpack.c.0.s8 %v913
    %v915 = vlaneseq
    %v916 = vshrl.u32 %v915, 7
    %v917 = vsub.s32 %v914, %v916
    %v918 = vrot.slane %v904, %v917
    %v919 = vcombine.low %v854, %v870
    %v920 = vcombine.high %v854, %v870
    %v922 = vunpack.c.l.s4 1934713408
    %v923 = vunpack.c.0.s8 %v922
    %v924 = vlaneseq
    %v925 = vshrl.u32 %v924, 7
    %v926 = vsub.s32 %v923, %v925
    %v927 = vrot.slane %v919, %v926
    %v929 = vunpack.c.l.s4 1934713408
    %v930 = vunpack.c.0.s8 %v929
    %v931 = vlaneseq
    %v932 = vshrl.u32 %v931, 7
    %v933 = vsub.s32 %v930, %v932
    %v934 = vrot.slane %v920, %v933
    %v935 = vcombine.low %v879, %v911
    %v936 = vcombine.high %v879, %v911
    %v937 = vcombine.low %v886, %v918
    %v938 = vcombine.high %v886, %v918
    %v939 = vcombine.low %v895, %v927
    %v940 = vcombine.high %v895, %v927
    %v941 = vcombine.low %v902, %v934
    %v942 = vcombine.high %v902, %v934
    %v943 = vcombine.low %v567, %v631
    %v944 = vcombine.high %v567, %v631
    %v946 = vunpack.c.l.s4 1983009808
    %v947 = vunpack.c.0.s8 %v946
    %v948 = vlaneseq
    %v949 = vshrl.u32 %v948, 7
    %v950 = vsub.s32 %v947, %v949
    %v951 = vrot.slane %v943, %v950
    %v953 = vunpack.c.l.s4 1983009808
    %v954 = vunpack.c.0.s8 %v953
    %v955 = vlaneseq
    %v956 = vshrl.u32 %v955, 7
    %v957 = vsub.s32 %v954, %v956
    %v958 = vrot.slane %v944, %v957
    %v959 = vcombine.low %v599, %v663
    %v960 = vcombine.high %v599, %v663
    %v962 = vunpack.c.l.s4 1983009808
    %v963 = vunpack.c.0.s8 %v962
    %v964 = vlaneseq
    %v965 = vshrl.u32 %v964, 7
    %v966 = vsub.s32 %v963, %v965
    %v967 = vrot.slane %v959, %v966
    %v969 = vunpack.c.l.s4 1983009808
    %v970 = vunpack.c.0.s8 %v969
    %v971 = vlaneseq
    %v972 = vshrl.u32 %v971, 7
    %v973 = vsub.s32 %v970, %v972
    %v974 = vrot.slane %v960, %v973
    %v975 = vcombine.low %v695, %v759
    %v976 = vcombine.high %v695, %v759
    %v978 = vunpack.c.l.s4 1983009808
    %v979 = vunpack.c.0.s8 %v978
    %v980 = vlaneseq
    %v981 = vshrl.u32 %v980, 7
    %v982 = vsub.s32 %v979, %v981
    %v983 = vrot.slane %v975, %v982
    %v985 = vunpack.c.l.s4 1983009808
    %v986 = vunpack.c.0.s8 %v985
    %v987 = vlaneseq
    %v988 = vshrl.u32 %v987, 7
    %v989 = vsub.s32 %v986, %v988
    %v990 = vrot.slane %v976, %v989
    %v991 = vcombine.low %v727, %v791
    %v992 = vcombine.high %v727, %v791
    %v994 = vunpack.c.l.s4 1983009808
    %v995 = vunpack.c.0.s8 %v994
    %v996 = vlaneseq
    %v997 = vshrl.u32 %v996, 7
    %v998 = vsub.s32 %v995, %v997
    %v999 = vrot.slane %v991, %v998
    %v1001 = vunpack.c.l.s4 1983009808
    %v1002 = vunpack.c.0.s8 %v1001
    %v1003 = vlaneseq
    %v1004 = vshrl.u32 %v1003, 7
    %v1005 = vsub.s32 %v1002, %v1004
    %v1006 = vrot.slane %v992, %v1005
    %v1007 = vcombine.low %v951, %v967
    %v1008 = vcombine.high %v951, %v967
    %v1010 = vunpack.c.l.s4 1934713408
    %v1011 = vunpack.c.0.s8 %v1010
    %v1012 = vlaneseq
    %v1013 = vshrl.u32 %v1012, 7
    %v1014 = vsub.s32 %v1011, %v1013
    %v1015 = vrot.slane %v1007, %v1014
    %v1017 = vunpack.c.l.s4 1934713408
    %v1018 = vunpack.c.0.s8 %v1017
    %v1019 = vlaneseq
    %v1020 = vshrl.u32 %v1019, 7
    %v1021 = vsub.s32 %v1018, %v1020
    %v1022 = vrot.slane %v1008, %v1021
    %v1023 = vcombine.low %v958, %v974
    %v1024 = vcombine.high %v958, %v974
    %v1026 = vunpack.c.l.s4 1934713408
    %v1027 = vunpack.c.0.s8 %v1026
    %v1028 = vlaneseq
    %v1029 = vshrl.u32 %v1028, 7
    %v1030 = vsub.s32 %v1027, %v1029
    %v1031 = vrot.slane %v1023, %v1030
    %v1033 = vunpack.c.l.s4 1934713408
    %v1034 = vunpack.c.0.s8 %v1033
    %v1035 = vlaneseq
    %v1036 = vshrl.u32 %v1035, 7
    %v1037 = vsub.s32 %v1034, %v1036
    %v1038 = vrot.slane %v1024, %v1037
    %v1039 = vcombine.low %v983, %v999
    %v1040 = vcombine.high %v983, %v999
    %v1042 = vunpack.c.l.s4 1934713408
    %v1043 = vunpack.c.0.s8 %v1042
    %v1044 = vlaneseq
    %v1045 = vshrl.u32 %v1044, 7
    %v1046 = vsub.s32 %v1043, %v1045
    %v1047 = vrot.slane %v1039, %v1046
    %v1049 = vunpack.c.l.s4 1934713408
    %v1050 = vunpack.c.0.s8 %v1049
    %v1051 = vlaneseq
    %v1052 = vshrl.u32 %v1051, 7
    %v1053 = vsub.s32 %v1050, %v1052
    %v1054 = vrot.slane %v1040, %v1053
    %v1055 = vcombine.low %v990, %v1006
    %v1056 = vcombine.high %v990, %v1006
    %v1058 = vunpack.c.l.s4 1934713408
    %v1059 = vunpack.c.0.s8 %v1058
    %v1060 = vlaneseq
    %v1061 = vshrl.u32 %v1060, 7
    %v1062 = vsub.s32 %v1059, %v1061
    %v1063 = vrot.slane %v1055, %v1062
    %v1065 = vunpack.c.l.s4 1934713408
    %v1066 = vunpack.c.0.s8 %v1065
    %v1067 = vlaneseq
    %v1068 = vshrl.u32 %v1067, 7
    %v1069 = vsub.s32 %v1066, %v1068
    %v1070 = vrot.slane %v1056, %v1069
    %v1071 = vcombine.low %v1015, %v1047
    %v1072 = vcombine.high %v1015, %v1047
    %v1073 = vcombine.low %v1022, %v1054
    %v1074 = vcombine.high %v1022, %v1054
    %v1075 = vcombine.low %v1031, %v1063
    %v1076 = vcombine.high %v1031, %v1063
    %v1077 = vcombine.low %v1038, %v1070
    %v1078 = vcombine.high %v1038, %v1070
    %v1079 = vcombine.low %v312, %v376
    %v1080 = vcombine.high %v312, %v376
    %v1082 = vunpack.c.l.s4 1983009808
    %v1083 = vunpack.c.0.s8 %v1082
    %v1084 = vlaneseq
    %v1085 = vshrl.u32 %v1084, 7
    %v1086 = vsub.s32 %v1083, %v1085
    %v1087 = vrot.slane %v1079, %v1086
    %v1089 = vunpack.c.l.s4 1983009808
    %v1090 = vunpack.c.0.s8 %v1089
    %v1091 = vlaneseq
    %v1092 = vshrl.u32 %v1091, 7
    %v1093 = vsub.s32 %v1090, %v1092
    %v1094 = vrot.slane %v1080, %v1093
    %v1095 = vcombine.low %v344, %v408
    %v1096 = vcombine.high %v344, %v408
    %v1098 = vunpack.c.l.s4 1983009808
    %v1099 = vunpack.c.0.s8 %v1098
    %v1100 = vlaneseq
    %v1101 = vshrl.u32 %v1100, 7
    %v1102 = vsub.s32 %v1099, %v1101
    %v1103 = vrot.slane %v1095, %v1102
    %v1105 = vunpack.c.l.s4 1983009808
    %v1106 = vunpack.c.0.s8 %v1105
    %v1107 = vlaneseq
    %v1108 = vshrl.u32 %v1107, 7
    %v1109 = vsub.s32 %v1106, %v1108
    %v1110 = vrot.slane %v1096, %v1109
    %v1111 = vcombine.low %v440, %v504
    %v1112 = vcombine.high %v440, %v504
    %v1114 = vunpack.c.l.s4 1983009808
    %v1115 = vunpack.c.0.s8 %v1114
    %v1116 = vlaneseq
    %v1117 = vshrl.u32 %v1116, 7
    %v1118 = vsub.s32 %v1115, %v1117
    %v1119 = vrot.slane %v1111, %v1118
    %v1121 = vunpack.c.l.s4 1983009808
    %v1122 = vunpack.c.0.s8 %v1121
    %v1123 = vlaneseq
    %v1124 = vshrl.u32 %v1123, 7
    %v1125 = vsub.s32 %v1122, %v1124
    %v1126 = vrot.slane %v1112, %v1125
    %v1127 = vcombine.low %v472, %v536
    %v1128 = vcombine.high %v472, %v536
    %v1130 = vunpack.c.l.s4 1983009808
    %v1131 = vunpack.c.0.s8 %v1130
    %v1132 = vlaneseq
    %v1133 = vshrl.u32 %v1132, 7
    %v1134 = vsub.s32 %v1131, %v1133
    %v1135 = vrot.slane %v1127, %v1134
    %v1137 = vunpack.c.l.s4 1983009808
    %v1138 = vunpack.c.0.s8 %v1137
    %v1139 = vlaneseq
    %v1140 = vshrl.u32 %v1139, 7
    %v1141 = vsub.s32 %v1138, %v1140
    %v1142 = vrot.slane %v1128, %v1141
    %v1143 = vcombine.low %v1087, %v1103
    %v1144 = vcombine.high %v1087, %v1103
    %v1146 = vunpack.c.l.s4 1934713408
    %v1147 = vunpack.c.0.s8 %v1146
    %v1148 = vlaneseq
    %v1149 = vshrl.u32 %v1148, 7
    %v1150 = vsub.s32 %v1147, %v1149
    %v1151 = vrot.slane %v1143, %v1150
    %v1153 = vunpack.c.l.s4 1934713408
    %v1154 = vunpack.c.0.s8 %v1153
    %v1155 = vlaneseq
    %v1156 = vshrl.u32 %v1155, 7
    %v1157 = vsub.s32 %v1154, %v1156
    %v1158 = vrot.slane %v1144, %v1157
    %v1159 = vcombine.low %v1094, %v1110
    %v1160 = vcombine.high %v1094, %v1110
    %v1162 = vunpack.c.l.s4 1934713408
    %v1163 = vunpack.c.0.s8 %v1162
    %v1164 = vlaneseq
    %v1165 = vshrl.u32 %v1164, 7
    %v1166 = vsub.s32 %v1163, %v1165
    %v1167 = vrot.slane %v1159, %v1166
    %v1169 = vunpack.c.l.s4 1934713408
    %v1170 = vunpack.c.0.s8 %v1169
    %v1171 = vlaneseq
    %v1172 = vshrl.u32 %v1171, 7
    %v1173 = vsub.s32 %v1170, %v1172
    %v1174 = vrot.slane %v1160, %v1173
    %v1175 = vcombine.low %v1119, %v1135
    %v1176 = vcombine.high %v1119, %v1135
    %v1178 = vunpack.c.l.s4 1934713408
    %v1179 = vunpack.c.0.s8 %v1178
    %v1180 = vlaneseq
    %v1181 = vshrl.u32 %v1180, 7
    %v1182 = vsub.s32 %v1179, %v1181
    %v1183 = vrot.slane %v1175, %v1182
    %v1185 = vunpack.c.l.s4 1934713408
    %v1186 = vunpack.c.0.s8 %v1185
    %v1187 = vlaneseq
    %v1188 = vshrl.u32 %v1187, 7
    %v1189 = vsub.s32 %v1186, %v1188
    %v1190 = vrot.slane %v1176, %v1189
    %v1191 = vcombine.low %v1126, %v1142
    %v1192 = vcombine.high %v1126, %v1142
    %v1194 = vunpack.c.l.s4 1934713408
    %v1195 = vunpack.c.0.s8 %v1194
    %v1196 = vlaneseq
    %v1197 = vshrl.u32 %v1196, 7
    %v1198 = vsub.s32 %v1195, %v1197
    %v1199 = vrot.slane %v1191, %v1198
    %v1201 = vunpack.c.l.s4 1934713408
    %v1202 = vunpack.c.0.s8 %v1201
    %v1203 = vlaneseq
    %v1204 = vshrl.u32 %v1203, 7
    %v1205 = vsub.s32 %v1202, %v1204
    %v1206 = vrot.slane %v1192, %v1205
    %v1207 = vcombine.low %v1151, %v1183
    %v1208 = vcombine.high %v1151, %v1183
    %v1209 = vcombine.low %v1158, %v1190
    %v1210 = vcombine.high %v1158, %v1190
    %v1211 = vcombine.low %v1167, %v1199
    %v1212 = vcombine.high %v1167, %v1199
    %v1213 = vcombine.low %v1174, %v1206
    %v1214 = vcombine.high %v1174, %v1206
    %v1215 = vcombine.low %v568, %v632
    %v1216 = vcombine.high %v568, %v632
    %v1218 = vunpack.c.l.s4 1983009808
    %v1219 = vunpack.c.0.s8 %v1218
    %v1220 = vlaneseq
    %v1221 = vshrl.u32 %v1220, 7
    %v1222 = vsub.s32 %v1219, %v1221
    %v1223 = vrot.slane %v1215, %v1222
    %v1225 = vunpack.c.l.s4 1983009808
    %v1226 = vunpack.c.0.s8 %v1225
    %v1227 = vlaneseq
    %v1228 = vshrl.u32 %v1227, 7
    %v1229 = vsub.s32 %v1226, %v1228
    %v1230 = vrot.slane %v1216, %v1229
    %v1231 = vcombine.low %v600, %v664
    %v1232 = vcombine.high %v600, %v664
    %v1234 = vunpack.c.l.s4 1983009808
    %v1235 = vunpack.c.0.s8 %v1234
    %v1236 = vlaneseq
    %v1237 = vshrl.u32 %v1236, 7
    %v1238 = vsub.s32 %v1235, %v1237
    %v1239 = vrot.slane %v1231, %v1238
    %v1241 = vunpack.c.l.s4 1983009808
    %v1242 = vunpack.c.0.s8 %v1241
    %v1243 = vlaneseq
    %v1244 = vshrl.u32 %v1243, 7
    %v1245 = vsub.s32 %v1242, %v1244
    %v1246 = vrot.slane %v1232, %v1245
    %v1247 = vcombine.low %v696, %v760
    %v1248 = vcombine.high %v696, %v760
    %v1250 = vunpack.c.l.s4 1983009808
    %v1251 = vunpack.c.0.s8 %v1250
    %v1252 = vlaneseq
    %v1253 = vshrl.u32 %v1252, 7
    %v1254 = vsub.s32 %v1251, %v1253
    %v1255 = vrot.slane %v1247, %v1254
    %v1257 = vunpack.c.l.s4 1983009808
    %v1258 = vunpack.c.0.s8 %v1257
    %v1259 = vlaneseq
    %v1260 = vshrl.u32 %v1259, 7
    %v1261 = vsub.s32 %v1258, %v1260
    %v1262 = vrot.slane %v1248, %v1261
    %v1263 = vcombine.low %v728, %v792
    %v1264 = vcombine.high %v728, %v792
    %v1266 = vunpack.c.l.s4 1983009808
    %v1267 = vunpack.c.0.s8 %v1266
    %v1268 = vlaneseq
    %v1269 = vshrl.u32 %v1268, 7
    %v1270 = vsub.s32 %v1267, %v1269
    %v1271 = vrot.slane %v1263, %v1270
    %v1273 = vunpack.c.l.s4 1983009808
    %v1274 = vunpack.c.0.s8 %v1273
    %v1275 = vlaneseq
    %v1276 = vshrl.u32 %v1275, 7
    %v1277 = vsub.s32 %v1274, %v1276
    %v1278 = vrot.slane %v1264, %v1277
    %v1279 = vcombine.low %v1223, %v1239
    %v1280 = vcombine.high %v1223, %v1239
    %v1282 = vunpack.c.l.s4 1934713408
    %v1283 = vunpack.c.0.s8 %v1282
    %v1284 = vlaneseq
    %v1285 = vshrl.u32 %v1284, 7
    %v1286 = vsub.s32 %v1283, %v1285
    %v1287 = vrot.slane %v1279, %v1286
    %v1289 = vunpack.c.l.s4 1934713408
    %v1290 = vunpack.c.0.s8 %v1289
    %v1291 = vlaneseq
    %v1292 = vshrl.u32 %v1291, 7
    %v1293 = vsub.s32 %v1290, %v1292
    %v1294 = vrot.slane %v1280, %v1293
    %v1295 = vcombine.low %v1230, %v1246
    %v1296 = vcombine.high %v1230, %v1246
    %v1298 = vunpack.c.l.s4 1934713408
    %v1299 = vunpack.c.0.s8 %v1298
    %v1300 = vlaneseq
    %v1301 = vshrl.u32 %v1300, 7
    %v1302 = vsub.s32 %v1299, %v1301
    %v1303 = vrot.slane %v1295, %v1302
    %v1305 = vunpack.c.l.s4 1934713408
    %v1306 = vunpack.c.0.s8 %v1305
    %v1307 = vlaneseq
    %v1308 = vshrl.u32 %v1307, 7
    %v1309 = vsub.s32 %v1306, %v1308
    %v1310 = vrot.slane %v1296, %v1309
    %v1311 = vcombine.low %v1255, %v1271
    %v1312 = vcombine.high %v1255, %v1271
    %v1314 = vunpack.c.l.s4 1934713408
    %v1315 = vunpack.c.0.s8 %v1314
    %v1316 = vlaneseq
    %v1317 = vshrl.u32 %v1316, 7
    %v1318 = vsub.s32 %v1315, %v1317
    %v1319 = vrot.slane %v1311, %v1318
    %v1321 = vunpack.c.l.s4 1934713408
    %v1322 = vunpack.c.0.s8 %v1321
    %v1323 = vlaneseq
    %v1324 = vshrl.u32 %v1323, 7
    %v1325 = vsub.s32 %v1322, %v1324
    %v1326 = vrot.slane %v1312, %v1325
    %v1327 = vcombine.low %v1262, %v1278
    %v1328 = vcombine.high %v1262, %v1278
    %v1330 = vunpack.c.l.s4 1934713408
    %v1331 = vunpack.c.0.s8 %v1330
    %v1332 = vlaneseq
    %v1333 = vshrl.u32 %v1332, 7
    %v1334 = vsub.s32 %v1331, %v1333
    %v1335 = vrot.slane %v1327, %v1334
    %v1337 = vunpack.c.l.s4 1934713408
    %v1338 = vunpack.c.0.s8 %v1337
    %v1339 = vlaneseq
    %v1340 = vshrl.u32 %v1339, 7
    %v1341 = vsub.s32 %v1338, %v1340
    %v1342 = vrot.slane %v1328, %v1341
    %v1343 = vcombine.low %v1287, %v1319
    %v1344 = vcombine.high %v1287, %v1319
    %v1345 = vcombine.low %v1294, %v1326
    %v1346 = vcombine.high %v1294, %v1326
    %v1347 = vcombine.low %v1303, %v1335
    %v1348 = vcombine.high %v1303, %v1335
    %v1349 = vcombine.low %v1310, %v1342
    %v1350 = vcombine.high %v1310, %v1342
    %1353 = vrot.lane.b32.xlu0 %v936, 4
    %v1354 = vpop.permute.xlu0 %1353
    %1355 = vrot.lane.b32.xlu0 %v1072, 4
    %v1356 = vpop.permute.xlu0 %1355
    %1361 = vrot.lane.b32.xlu0 %v937, 8
    %v1362 = vpop.permute.xlu0 %1361
    %1363 = vrot.lane.b32.xlu0 %v1073, 8
    %v1364 = vpop.permute.xlu0 %1363
    %1369 = vrot.lane.b32.xlu0 %v938, 12
    %v1370 = vpop.permute.xlu0 %1369
    %1371 = vrot.lane.b32.xlu0 %v1074, 12
    %v1372 = vpop.permute.xlu0 %1371
    %1377 = vrot.lane.b32.xlu0 %v939, 16
    %v1378 = vpop.permute.xlu0 %1377
    %1379 = vrot.lane.b32.xlu0 %v1075, 16
    %v1380 = vpop.permute.xlu0 %1379
    %1385 = vrot.lane.b32.xlu0 %v940, 20
    %v1386 = vpop.permute.xlu0 %1385
    %1387 = vrot.lane.b32.xlu0 %v1076, 20
    %v1388 = vpop.permute.xlu0 %1387
    %1393 = vrot.lane.b32.xlu0 %v941, 24
    %v1394 = vpop.permute.xlu0 %1393
    %1395 = vrot.lane.b32.xlu0 %v1077, 24
    %v1396 = vpop.permute.xlu0 %1395
    %1401 = vrot.lane.b32.xlu0 %v942, 28
    %v1402 = vpop.permute.xlu0 %1401
    %1403 = vrot.lane.b32.xlu0 %v1078, 28
    %v1404 = vpop.permute.xlu0 %1403
    %1409 = vrot.lane.b32.xlu0 %v1207, 32
    %v1410 = vpop.permute.xlu0 %1409
    %1411 = vrot.lane.b32.xlu0 %v1343, 32
    %v1412 = vpop.permute.xlu0 %1411
    %1417 = vrot.lane.b32.xlu0 %v1208, 36
    %v1418 = vpop.permute.xlu0 %1417
    %1419 = vrot.lane.b32.xlu0 %v1344, 36
    %v1420 = vpop.permute.xlu0 %1419
    %1425 = vrot.lane.b32.xlu0 %v1209, 40
    %v1426 = vpop.permute.xlu0 %1425
    %1427 = vrot.lane.b32.xlu0 %v1345, 40
    %v1428 = vpop.permute.xlu0 %1427
    %1433 = vrot.lane.b32.xlu0 %v1210, 44
    %v1434 = vpop.permute.xlu0 %1433
    %1435 = vrot.lane.b32.xlu0 %v1346, 44
    %v1436 = vpop.permute.xlu0 %1435
    %1441 = vrot.lane.b32.xlu0 %v1211, 48
    %v1442 = vpop.permute.xlu0 %1441
    %1443 = vrot.lane.b32.xlu0 %v1347, 48
    %v1444 = vpop.permute.xlu0 %1443
    %1449 = vrot.lane.b32.xlu0 %v1212, 52
    %v1450 = vpop.permute.xlu0 %1449
    %1451 = vrot.lane.b32.xlu0 %v1348, 52
    %v1452 = vpop.permute.xlu0 %1451
    %1457 = vrot.lane.b32.xlu0 %v1213, 56
    %v1458 = vpop.permute.xlu0 %1457
    %1459 = vrot.lane.b32.xlu0 %v1349, 56
    %v1460 = vpop.permute.xlu0 %1459
    %1465 = vrot.lane.b32.xlu0 %v1214, 60
    %v1466 = vpop.permute.xlu0 %1465
    %1467 = vrot.lane.b32.xlu0 %v1350, 60
    %v1468 = vpop.permute.xlu0 %1467
    %vm1471 = vcmask 31744
    %v1472 = vsel %vm1471, %v935, %v1354
    %v1473 = vsel %vm1471, %v1071, %v1356
    %vm1474 = vcmask 64512
    %v1475 = vsel %vm1474, %v1472, %v1362
    %v1476 = vsel %vm1474, %v1473, %v1364
    %vm1477 = vcmask 97280
    %v1478 = vsel %vm1477, %v1475, %v1370
    %v1479 = vsel %vm1477, %v1476, %v1372
    %vm1480 = vcmask 130048
    %v1481 = vsel %vm1480, %v1478, %v1378
    %v1482 = vsel %vm1480, %v1479, %v1380
    %vm1483 = vcmask 162816
    %v1484 = vsel %vm1483, %v1481, %v1386
    %v1485 = vsel %vm1483, %v1482, %v1388
    %vm1486 = vcmask 195584
    %v1487 = vsel %vm1486, %v1484, %v1394
    %v1488 = vsel %vm1486, %v1485, %v1396
    %vm1489 = vcmask 228352
    %v1490 = vsel %vm1489, %v1487, %v1402
    %v1491 = vsel %vm1489, %v1488, %v1404
    %vm1492 = vcmask 261120
    %v1493 = vsel %vm1492, %v1490, %v1410
    %v1494 = vsel %vm1492, %v1491, %v1412
    %vm1495 = vcmask 293888
    %v1496 = vsel %vm1495, %v1493, %v1418
    %v1497 = vsel %vm1495, %v1494, %v1420
    %vm1498 = vcmask 326656
    %v1499 = vsel %vm1498, %v1496, %v1426
    %v1500 = vsel %vm1498, %v1497, %v1428
    %vm1501 = vcmask 359424
    %v1502 = vsel %vm1501, %v1499, %v1434
    %v1503 = vsel %vm1501, %v1500, %v1436
    %vm1504 = vcmask 392192
    %v1505 = vsel %vm1504, %v1502, %v1442
    %v1506 = vsel %vm1504, %v1503, %v1444
    %vm1507 = vcmask 424960
    %v1508 = vsel %vm1507, %v1505, %v1450
    %v1509 = vsel %vm1507, %v1506, %v1452
    %vm1510 = vcmask 457728
    %v1511 = vsel %vm1510, %v1508, %v1458
    %v1512 = vsel %vm1510, %v1509, %v1460
    %vm1513 = vcmask 490496
    %v1514 = vsel %vm1513, %v1511, %v1466
    %v1515 = vsel %vm1513, %v1512, %v1468
    %vm1516 = vcmask 523264
    %1517 = vst.msk [vmem:[#allocation5] sm:$0xff] %vm1516, %v1514
    %1518 = vst.msk [vmem:[#allocation5 + $0x8] sm:$0xff] %vm1516, %v1515
    %s1519 = scalar_lea.vmem [#allocation2], 64
    %v1520 = vld [vmem:[%s1519] sm:$0xff]
    %v1521 = vld [vmem:[%s1519 + $0x8] sm:$0xff]
    %v1522 = vld [vmem:[%s1519 + $0x10] sm:$0xff]
    %v1523 = vld [vmem:[%s1519 + $0x18] sm:$0xff]
    %v1524 = vld [vmem:[%s1519 + $0x20] sm:$0xff]
    %v1525 = vld [vmem:[%s1519 + $0x28] sm:$0xff]
    %v1526 = vld [vmem:[%s1519 + $0x30] sm:$0xff]
    %v1527 = vld [vmem:[%s1519 + $0x38] sm:$0xff]
    %1528 = vxpose.xlu0.b32.start [1/16] %v1520, 128
    %1529 = vxpose.xlu0.b32.cont [2/16] %v1521, 128
    %1530 = vxpose.xlu0.b32.cont [3/16] 0.0, 128
    %1531 = vxpose.xlu0.b32.cont [4/16] 0.0, 128
    %1532 = vxpose.xlu0.b32.cont [5/16] 0.0, 128
    %1533 = vxpose.xlu0.b32.cont [6/16] 0.0, 128
    %1534 = vxpose.xlu0.b32.cont [7/16] 0.0, 128
    %1535 = vxpose.xlu0.b32.cont [8/16] 0.0, 128
    %1536 = vxpose.xlu0.b32.cont [9/16] 0.0, 128
    %1537 = vxpose.xlu0.b32.cont [10/16] 0.0, 128
    %1538 = vxpose.xlu0.b32.cont [11/16] 0.0, 128
    %1539 = vxpose.xlu0.b32.cont [12/16] 0.0, 128
    %1540 = vxpose.xlu0.b32.cont [13/16] 0.0, 128
    %1541 = vxpose.xlu0.b32.cont [14/16] 0.0, 128
    %1542 = vxpose.xlu0.b32.cont [15/16] 0.0, 128
    %1543 = vxpose.xlu0.b32.end [16/16] 0.0, 128
    %v1544 = vpop.trf.xlu0
    %v1545 = vpop.trf.xlu0
    %v1546 = vpop.trf.xlu0
    %v1547 = vpop.trf.xlu0
    %v1548 = vpop.trf.xlu0
    %v1549 = vpop.trf.xlu0
    %v1550 = vpop.trf.xlu0
    %v1551 = vpop.trf.xlu0
    %v1552 = vpop.trf.xlu0
    %v1553 = vpop.trf.xlu0
    %v1554 = vpop.trf.xlu0
    %v1555 = vpop.trf.xlu0
    %v1556 = vpop.trf.xlu0
    %v1557 = vpop.trf.xlu0
    %v1558 = vpop.trf.xlu0
    %v1559 = vpop.trf.xlu0
    %1560 = vxpose.xlu0.b32.start [1/16] %v1522, 128
    %1561 = vxpose.xlu0.b32.cont [2/16] %v1523, 128
    %1562 = vxpose.xlu0.b32.cont [3/16] 0.0, 128
    %1563 = vxpose.xlu0.b32.cont [4/16] 0.0, 128
    %1564 = vxpose.xlu0.b32.cont [5/16] 0.0, 128
    %1565 = vxpose.xlu0.b32.cont [6/16] 0.0, 128
    %1566 = vxpose.xlu0.b32.cont [7/16] 0.0, 128
    %1567 = vxpose.xlu0.b32.cont [8/16] 0.0, 128
    %1568 = vxpose.xlu0.b32.cont [9/16] 0.0, 128
    %1569 = vxpose.xlu0.b32.cont [10/16] 0.0, 128
    %1570 = vxpose.xlu0.b32.cont [11/16] 0.0, 128
    %1571 = vxpose.xlu0.b32.cont [12/16] 0.0, 128
    %1572 = vxpose.xlu0.b32.cont [13/16] 0.0, 128
    %1573 = vxpose.xlu0.b32.cont [14/16] 0.0, 128
    %1574 = vxpose.xlu0.b32.cont [15/16] 0.0, 128
    %1575 = vxpose.xlu0.b32.end [16/16] 0.0, 128
    %v1576 = vpop.trf.xlu0
    %v1577 = vpop.trf.xlu0
    %v1578 = vpop.trf.xlu0
    %v1579 = vpop.trf.xlu0
    %v1580 = vpop.trf.xlu0
    %v1581 = vpop.trf.xlu0
    %v1582 = vpop.trf.xlu0
    %v1583 = vpop.trf.xlu0
    %v1584 = vpop.trf.xlu0
    %v1585 = vpop.trf.xlu0
    %v1586 = vpop.trf.xlu0
    %v1587 = vpop.trf.xlu0
    %v1588 = vpop.trf.xlu0
    %v1589 = vpop.trf.xlu0
    %v1590 = vpop.trf.xlu0
    %v1591 = vpop.trf.xlu0
    %1592 = vxpose.xlu0.b32.start [1/16] %v1524, 128
    %1593 = vxpose.xlu0.b32.cont [2/16] %v1525, 128
    %1594 = vxpose.xlu0.b32.cont [3/16] 0.0, 128
    %1595 = vxpose.xlu0.b32.cont [4/16] 0.0, 128
    %1596 = vxpose.xlu0.b32.cont [5/16] 0.0, 128
    %1597 = vxpose.xlu0.b32.cont [6/16] 0.0, 128
    %1598 = vxpose.xlu0.b32.cont [7/16] 0.0, 128
    %1599 = vxpose.xlu0.b32.cont [8/16] 0.0, 128
    %1600 = vxpose.xlu0.b32.cont [9/16] 0.0, 128
    %1601 = vxpose.xlu0.b32.cont [10/16] 0.0, 128
    %1602 = vxpose.xlu0.b32.cont [11/16] 0.0, 128
    %1603 = vxpose.xlu0.b32.cont [12/16] 0.0, 128
    %1604 = vxpose.xlu0.b32.cont [13/16] 0.0, 128
    %1605 = vxpose.xlu0.b32.cont [14/16] 0.0, 128
    %1606 = vxpose.xlu0.b32.cont [15/16] 0.0, 128
    %1607 = vxpose.xlu0.b32.end [16/16] 0.0, 128
    %v1608 = vpop.trf.xlu0
    %v1609 = vpop.trf.xlu0
    %v1610 = vpop.trf.xlu0
    %v1611 = vpop.trf.xlu0
    %v1612 = vpop.trf.xlu0
    %v1613 = vpop.trf.xlu0
    %v1614 = vpop.trf.xlu0
    %v1615 = vpop.trf.xlu0
    %v1616 = vpop.trf.xlu0
    %v1617 = vpop.trf.xlu0
    %v1618 = vpop.trf.xlu0
    %v1619 = vpop.trf.xlu0
    %v1620 = vpop.trf.xlu0
    %v1621 = vpop.trf.xlu0
    %v1622 = vpop.trf.xlu0
    %v1623 = vpop.trf.xlu0
    %1624 = vxpose.xlu0.b32.start [1/16] %v1526, 128
    %1625 = vxpose.xlu0.b32.cont [2/16] %v1527, 128
    %1626 = vxpose.xlu0.b32.cont [3/16] 0.0, 128
    %1627 = vxpose.xlu0.b32.cont [4/16] 0.0, 128
    %1628 = vxpose.xlu0.b32.cont [5/16] 0.0, 128
    %1629 = vxpose.xlu0.b32.cont [6/16] 0.0, 128
    %1630 = vxpose.xlu0.b32.cont [7/16] 0.0, 128
    %1631 = vxpose.xlu0.b32.cont [8/16] 0.0, 128
    %1632 = vxpose.xlu0.b32.cont [9/16] 0.0, 128
    %1633 = vxpose.xlu0.b32.cont [10/16] 0.0, 128
    %1634 = vxpose.xlu0.b32.cont [11/16] 0.0, 128
    %1635 = vxpose.xlu0.b32.cont [12/16] 0.0, 128
    %1636 = vxpose.xlu0.b32.cont [13/16] 0.0, 128
    %1637 = vxpose.xlu0.b32.cont [14/16] 0.0, 128
    %1638 = vxpose.xlu0.b32.cont [15/16] 0.0, 128
    %1639 = vxpose.xlu0.b32.end [16/16] 0.0, 128
    %v1640 = vpop.trf.xlu0
    %v1641 = vpop.trf.xlu0
    %v1642 = vpop.trf.xlu0
    %v1643 = vpop.trf.xlu0
    %v1644 = vpop.trf.xlu0
    %v1645 = vpop.trf.xlu0
    %v1646 = vpop.trf.xlu0
    %v1647 = vpop.trf.xlu0
    %v1648 = vpop.trf.xlu0
    %v1649 = vpop.trf.xlu0
    %v1650 = vpop.trf.xlu0
    %v1651 = vpop.trf.xlu0
    %v1652 = vpop.trf.xlu0
    %v1653 = vpop.trf.xlu0
    %v1654 = vpop.trf.xlu0
    %v1655 = vpop.trf.xlu0
    %v1656 = vcombine.low %v1544, %v1608
    %v1657 = vcombine.high %v1544, %v1608
    %v1659 = vunpack.c.l.s4 1983009808
    %v1660 = vunpack.c.0.s8 %v1659
    %v1661 = vlaneseq
    %v1662 = vshrl.u32 %v1661, 7
    %v1663 = vsub.s32 %v1660, %v1662
    %v1664 = vrot.slane %v1656, %v1663
    %v1666 = vunpack.c.l.s4 1983009808
    %v1667 = vunpack.c.0.s8 %v1666
    %v1668 = vlaneseq
    %v1669 = vshrl.u32 %v1668, 7
    %v1670 = vsub.s32 %v1667, %v1669
    %v1671 = vrot.slane %v1657, %v1670
    %v1672 = vcombine.low %v1576, %v1640
    %v1673 = vcombine.high %v1576, %v1640
    %v1675 = vunpack.c.l.s4 1983009808
    %v1676 = vunpack.c.0.s8 %v1675
    %v1677 = vlaneseq
    %v1678 = vshrl.u32 %v1677, 7
    %v1679 = vsub.s32 %v1676, %v1678
    %v1680 = vrot.slane %v1672, %v1679
    %v1682 = vunpack.c.l.s4 1983009808
    %v1683 = vunpack.c.0.s8 %v1682
    %v1684 = vlaneseq
    %v1685 = vshrl.u32 %v1684, 7
    %v1686 = vsub.s32 %v1683, %v1685
    %v1687 = vrot.slane %v1673, %v1686
    %v1688 = vcombine.low %v1664, %v1680
    %v1689 = vcombine.high %v1664, %v1680
    %v1691 = vunpack.c.l.s4 1934713408
    %v1692 = vunpack.c.0.s8 %v1691
    %v1693 = vlaneseq
    %v1694 = vshrl.u32 %v1693, 7
    %v1695 = vsub.s32 %v1692, %v1694
    %v1696 = vrot.slane %v1688, %v1695
    %v1698 = vunpack.c.l.s4 1934713408
    %v1699 = vunpack.c.0.s8 %v1698
    %v1700 = vlaneseq
    %v1701 = vshrl.u32 %v1700, 7
    %v1702 = vsub.s32 %v1699, %v1701
    %v1703 = vrot.slane %v1689, %v1702
    %v1704 = vcombine.low %v1671, %v1687
    %v1705 = vcombine.high %v1671, %v1687
    %v1707 = vunpack.c.l.s4 1934713408
    %v1708 = vunpack.c.0.s8 %v1707
    %v1709 = vlaneseq
    %v1710 = vshrl.u32 %v1709, 7
    %v1711 = vsub.s32 %v1708, %v1710
    %v1712 = vrot.slane %v1704, %v1711
    %v1714 = vunpack.c.l.s4 1934713408
    %v1715 = vunpack.c.0.s8 %v1714
    %v1716 = vlaneseq
    %v1717 = vshrl.u32 %v1716, 7
    %v1718 = vsub.s32 %v1715, %v1717
    %v1719 = vrot.slane %v1705, %v1718
    %v1720 = vcombine.high %v1696, 0.0
    %v1721 = vcombine.high %v1703, 0.0
    %v1722 = vcombine.high %v1712, 0.0
    %v1723 = vcombine.high %v1719, 0.0
    %v1724 = vcombine.low %v1545, %v1609
    %v1725 = vcombine.high %v1545, %v1609
    %v1727 = vunpack.c.l.s4 1983009808
    %v1728 = vunpack.c.0.s8 %v1727
    %v1729 = vlaneseq
    %v1730 = vshrl.u32 %v1729, 7
    %v1731 = vsub.s32 %v1728, %v1730
    %v1732 = vrot.slane %v1724, %v1731
    %v1734 = vunpack.c.l.s4 1983009808
    %v1735 = vunpack.c.0.s8 %v1734
    %v1736 = vlaneseq
    %v1737 = vshrl.u32 %v1736, 7
    %v1738 = vsub.s32 %v1735, %v1737
    %v1739 = vrot.slane %v1725, %v1738
    %v1740 = vcombine.low %v1577, %v1641
    %v1741 = vcombine.high %v1577, %v1641
    %v1743 = vunpack.c.l.s4 1983009808
    %v1744 = vunpack.c.0.s8 %v1743
    %v1745 = vlaneseq
    %v1746 = vshrl.u32 %v1745, 7
    %v1747 = vsub.s32 %v1744, %v1746
    %v1748 = vrot.slane %v1740, %v1747
    %v1750 = vunpack.c.l.s4 1983009808
    %v1751 = vunpack.c.0.s8 %v1750
    %v1752 = vlaneseq
    %v1753 = vshrl.u32 %v1752, 7
    %v1754 = vsub.s32 %v1751, %v1753
    %v1755 = vrot.slane %v1741, %v1754
    %v1756 = vcombine.low %v1732, %v1748
    %v1757 = vcombine.high %v1732, %v1748
    %v1759 = vunpack.c.l.s4 1934713408
    %v1760 = vunpack.c.0.s8 %v1759
    %v1761 = vlaneseq
    %v1762 = vshrl.u32 %v1761, 7
    %v1763 = vsub.s32 %v1760, %v1762
    %v1764 = vrot.slane %v1756, %v1763
    %v1766 = vunpack.c.l.s4 1934713408
    %v1767 = vunpack.c.0.s8 %v1766
    %v1768 = vlaneseq
    %v1769 = vshrl.u32 %v1768, 7
    %v1770 = vsub.s32 %v1767, %v1769
    %v1771 = vrot.slane %v1757, %v1770
    %v1772 = vcombine.low %v1739, %v1755
    %v1773 = vcombine.high %v1739, %v1755
    %v1775 = vunpack.c.l.s4 1934713408
    %v1776 = vunpack.c.0.s8 %v1775
    %v1777 = vlaneseq
    %v1778 = vshrl.u32 %v1777, 7
    %v1779 = vsub.s32 %v1776, %v1778
    %v1780 = vrot.slane %v1772, %v1779
    %v1782 = vunpack.c.l.s4 1934713408
    %v1783 = vunpack.c.0.s8 %v1782
    %v1784 = vlaneseq
    %v1785 = vshrl.u32 %v1784, 7
    %v1786 = vsub.s32 %v1783, %v1785
    %v1787 = vrot.slane %v1773, %v1786
    %v1788 = vcombine.high %v1764, 0.0
    %v1789 = vcombine.high %v1771, 0.0
    %v1790 = vcombine.high %v1780, 0.0
    %v1791 = vcombine.high %v1787, 0.0
    %1792 = vxpose.xlu0.b32.start [1/16] %v1696, 128
    %1793 = vxpose.xlu0.b32.cont [2/16] 0.0, 128
    %1794 = vxpose.xlu0.b32.cont [3/16] 0.0, 128
    %1795 = vxpose.xlu0.b32.cont [4/16] 0.0, 128
    %1796 = vxpose.xlu0.b32.cont [5/16] 0.0, 128
    %1797 = vxpose.xlu0.b32.cont [6/16] 0.0, 128
    %1798 = vxpose.xlu0.b32.cont [7/16] 0.0, 128
    %1799 = vxpose.xlu0.b32.cont [8/16] 0.0, 128
    %1800 = vxpose.xlu0.b32.cont [9/16] 0.0, 128
    %1801 = vxpose.xlu0.b32.cont [10/16] 0.0, 128
    %1802 = vxpose.xlu0.b32.cont [11/16] 0.0, 128
    %1803 = vxpose.xlu0.b32.cont [12/16] 0.0, 128
    %1804 = vxpose.xlu0.b32.cont [13/16] 0.0, 128
    %1805 = vxpose.xlu0.b32.cont [14/16] 0.0, 128
    %1806 = vxpose.xlu0.b32.cont [15/16] 0.0, 128
    %1807 = vxpose.xlu0.b32.end [16/16] 0.0, 128
    %v1808 = vpop.trf.xlu0
    %v1809 = vpop.trf.xlu0
    %v1810 = vpop.trf.xlu0
    %v1811 = vpop.trf.xlu0
    %v1812 = vpop.trf.xlu0
    %v1813 = vpop.trf.xlu0
    %v1814 = vpop.trf.xlu0
    %v1815 = vpop.trf.xlu0
    %v1816 = vpop.trf.xlu0
    %v1817 = vpop.trf.xlu0
    %v1818 = vpop.trf.xlu0
    %v1819 = vpop.trf.xlu0
    %v1820 = vpop.trf.xlu0
    %v1821 = vpop.trf.xlu0
    %v1822 = vpop.trf.xlu0
    %v1823 = vpop.trf.xlu0
    %1824 = vxpose.xlu0.b32.start [1/16] %v1720, 128
    %1825 = vxpose.xlu0.b32.cont [2/16] 0.0, 128
    %1826 = vxpose.xlu0.b32.cont [3/16] 0.0, 128
    %1827 = vxpose.xlu0.b32.cont [4/16] 0.0, 128
    %1828 = vxpose.xlu0.b32.cont [5/16] 0.0, 128
    %1829 = vxpose.xlu0.b32.cont [6/16] 0.0, 128
    %1830 = vxpose.xlu0.b32.cont [7/16] 0.0, 128
    %1831 = vxpose.xlu0.b32.cont [8/16] 0.0, 128
    %1832 = vxpose.xlu0.b32.cont [9/16] 0.0, 128
    %1833 = vxpose.xlu0.b32.cont [10/16] 0.0, 128
    %1834 = vxpose.xlu0.b32.cont [11/16] 0.0, 128
    %1835 = vxpose.xlu0.b32.cont [12/16] 0.0, 128
    %1836 = vxpose.xlu0.b32.cont [13/16] 0.0, 128
    %1837 = vxpose.xlu0.b32.cont [14/16] 0.0, 128
    %1838 = vxpose.xlu0.b32.cont [15/16] 0.0, 128
    %1839 = vxpose.xlu0.b32.end [16/16] 0.0, 128
    %v1840 = vpop.trf.xlu0
    %v1841 = vpop.trf.xlu0
    %v1842 = vpop.trf.xlu0
    %v1843 = vpop.trf.xlu0
    %v1844 = vpop.trf.xlu0
    %v1845 = vpop.trf.xlu0
    %v1846 = vpop.trf.xlu0
    %v1847 = vpop.trf.xlu0
    %v1848 = vpop.trf.xlu0
    %v1849 = vpop.trf.xlu0
    %v1850 = vpop.trf.xlu0
    %v1851 = vpop.trf.xlu0
    %v1852 = vpop.trf.xlu0
    %v1853 = vpop.trf.xlu0
    %v1854 = vpop.trf.xlu0
    %v1855 = vpop.trf.xlu0
    %1856 = vxpose.xlu0.b32.start [1/16] %v1703, 128
    %1857 = vxpose.xlu0.b32.cont [2/16] 0.0, 128
    %1858 = vxpose.xlu0.b32.cont [3/16] 0.0, 128
    %1859 = vxpose.xlu0.b32.cont [4/16] 0.0, 128
    %1860 = vxpose.xlu0.b32.cont [5/16] 0.0, 128
    %1861 = vxpose.xlu0.b32.cont [6/16] 0.0, 128
    %1862 = vxpose.xlu0.b32.cont [7/16] 0.0, 128
    %1863 = vxpose.xlu0.b32.cont [8/16] 0.0, 128
    %1864 = vxpose.xlu0.b32.cont [9/16] 0.0, 128
    %1865 = vxpose.xlu0.b32.cont [10/16] 0.0, 128
    %1866 = vxpose.xlu0.b32.cont [11/16] 0.0, 128
    %1867 = vxpose.xlu0.b32.cont [12/16] 0.0, 128
    %1868 = vxpose.xlu0.b32.cont [13/16] 0.0, 128
    %1869 = vxpose.xlu0.b32.cont [14/16] 0.0, 128
    %1870 = vxpose.xlu0.b32.cont [15/16] 0.0, 128
    %1871 = vxpose.xlu0.b32.end [16/16] 0.0, 128
    %v1872 = vpop.trf.xlu0
    %v1873 = vpop.trf.xlu0
    %v1874 = vpop.trf.xlu0
    %v1875 = vpop.trf.xlu0
    %v1876 = vpop.trf.xlu0
    %v1877 = vpop.trf.xlu0
    %v1878 = vpop.trf.xlu0
    %v1879 = vpop.trf.xlu0
    %v1880 = vpop.trf.xlu0
    %v1881 = vpop.trf.xlu0
    %v1882 = vpop.trf.xlu0
    %v1883 = vpop.trf.xlu0
    %v1884 = vpop.trf.xlu0
    %v1885 = vpop.trf.xlu0
    %v1886 = vpop.trf.xlu0
    %v1887 = vpop.trf.xlu0
    %1888 = vxpose.xlu0.b32.start [1/16] %v1721, 128
    %1889 = vxpose.xlu0.b32.cont [2/16] 0.0, 128
    %1890 = vxpose.xlu0.b32.cont [3/16] 0.0, 128
    %1891 = vxpose.xlu0.b32.cont [4/16] 0.0, 128
    %1892 = vxpose.xlu0.b32.cont [5/16] 0.0, 128
    %1893 = vxpose.xlu0.b32.cont [6/16] 0.0, 128
    %1894 = vxpose.xlu0.b32.cont [7/16] 0.0, 128
    %1895 = vxpose.xlu0.b32.cont [8/16] 0.0, 128
    %1896 = vxpose.xlu0.b32.cont [9/16] 0.0, 128
    %1897 = vxpose.xlu0.b32.cont [10/16] 0.0, 128
    %1898 = vxpose.xlu0.b32.cont [11/16] 0.0, 128
    %1899 = vxpose.xlu0.b32.cont [12/16] 0.0, 128
    %1900 = vxpose.xlu0.b32.cont [13/16] 0.0, 128
    %1901 = vxpose.xlu0.b32.cont [14/16] 0.0, 128
    %1902 = vxpose.xlu0.b32.cont [15/16] 0.0, 128
    %1903 = vxpose.xlu0.b32.end [16/16] 0.0, 128
    %v1904 = vpop.trf.xlu0
    %v1905 = vpop.trf.xlu0
    %v1906 = vpop.trf.xlu0
    %v1907 = vpop.trf.xlu0
    %v1908 = vpop.trf.xlu0
    %v1909 = vpop.trf.xlu0
    %v1910 = vpop.trf.xlu0
    %v1911 = vpop.trf.xlu0
    %v1912 = vpop.trf.xlu0
    %v1913 = vpop.trf.xlu0
    %v1914 = vpop.trf.xlu0
    %v1915 = vpop.trf.xlu0
    %v1916 = vpop.trf.xlu0
    %v1917 = vpop.trf.xlu0
    %v1918 = vpop.trf.xlu0
    %v1919 = vpop.trf.xlu0
    %1920 = vxpose.xlu0.b32.start [1/16] %v1712, 128
    %1921 = vxpose.xlu0.b32.cont [2/16] 0.0, 128
    %1922 = vxpose.xlu0.b32.cont [3/16] 0.0, 128
    %1923 = vxpose.xlu0.b32.cont [4/16] 0.0, 128
    %1924 = vxpose.xlu0.b32.cont [5/16] 0.0, 128
    %1925 = vxpose.xlu0.b32.cont [6/16] 0.0, 128
    %1926 = vxpose.xlu0.b32.cont [7/16] 0.0, 128
    %1927 = vxpose.xlu0.b32.cont [8/16] 0.0, 128
    %1928 = vxpose.xlu0.b32.cont [9/16] 0.0, 128
    %1929 = vxpose.xlu0.b32.cont [10/16] 0.0, 128
    %1930 = vxpose.xlu0.b32.cont [11/16] 0.0, 128
    %1931 = vxpose.xlu0.b32.cont [12/16] 0.0, 128
    %1932 = vxpose.xlu0.b32.cont [13/16] 0.0, 128
    %1933 = vxpose.xlu0.b32.cont [14/16] 0.0, 128
    %1934 = vxpose.xlu0.b32.cont [15/16] 0.0, 128
    %1935 = vxpose.xlu0.b32.end [16/16] 0.0, 128
    %v1936 = vpop.trf.xlu0
    %v1937 = vpop.trf.xlu0
    %v1938 = vpop.trf.xlu0
    %v1939 = vpop.trf.xlu0
    %v1940 = vpop.trf.xlu0
    %v1941 = vpop.trf.xlu0
    %v1942 = vpop.trf.xlu0
    %v1943 = vpop.trf.xlu0
    %v1944 = vpop.trf.xlu0
    %v1945 = vpop.trf.xlu0
    %v1946 = vpop.trf.xlu0
    %v1947 = vpop.trf.xlu0
    %v1948 = vpop.trf.xlu0
    %v1949 = vpop.trf.xlu0
    %v1950 = vpop.trf.xlu0
    %v1951 = vpop.trf.xlu0
    %1952 = vxpose.xlu0.b32.start [1/16] %v1722, 128
    %1953 = vxpose.xlu0.b32.cont [2/16] 0.0, 128
    %1954 = vxpose.xlu0.b32.cont [3/16] 0.0, 128
    %1955 = vxpose.xlu0.b32.cont [4/16] 0.0, 128
    %1956 = vxpose.xlu0.b32.cont [5/16] 0.0, 128
    %1957 = vxpose.xlu0.b32.cont [6/16] 0.0, 128
    %1958 = vxpose.xlu0.b32.cont [7/16] 0.0, 128
    %1959 = vxpose.xlu0.b32.cont [8/16] 0.0, 128
    %1960 = vxpose.xlu0.b32.cont [9/16] 0.0, 128
    %1961 = vxpose.xlu0.b32.cont [10/16] 0.0, 128
    %1962 = vxpose.xlu0.b32.cont [11/16] 0.0, 128
    %1963 = vxpose.xlu0.b32.cont [12/16] 0.0, 128
    %1964 = vxpose.xlu0.b32.cont [13/16] 0.0, 128
    %1965 = vxpose.xlu0.b32.cont [14/16] 0.0, 128
    %1966 = vxpose.xlu0.b32.cont [15/16] 0.0, 128
    %1967 = vxpose.xlu0.b32.end [16/16] 0.0, 128
    %v1968 = vpop.trf.xlu0
    %v1969 = vpop.trf.xlu0
    %v1970 = vpop.trf.xlu0
    %v1971 = vpop.trf.xlu0
    %v1972 = vpop.trf.xlu0
    %v1973 = vpop.trf.xlu0
    %v1974 = vpop.trf.xlu0
    %v1975 = vpop.trf.xlu0
    %v1976 = vpop.trf.xlu0
    %v1977 = vpop.trf.xlu0
    %v1978 = vpop.trf.xlu0
    %v1979 = vpop.trf.xlu0
    %v1980 = vpop.trf.xlu0
    %v1981 = vpop.trf.xlu0
    %v1982 = vpop.trf.xlu0
    %v1983 = vpop.trf.xlu0
    %1984 = vxpose.xlu0.b32.start [1/16] %v1719, 128
    %1985 = vxpose.xlu0.b32.cont [2/16] 0.0, 128
    %1986 = vxpose.xlu0.b32.cont [3/16] 0.0, 128
    %1987 = vxpose.xlu0.b32.cont [4/16] 0.0, 128
    %1988 = vxpose.xlu0.b32.cont [5/16] 0.0, 128
    %1989 = vxpose.xlu0.b32.cont [6/16] 0.0, 128
    %1990 = vxpose.xlu0.b32.cont [7/16] 0.0, 128
    %1991 = vxpose.xlu0.b32.cont [8/16] 0.0, 128
    %1992 = vxpose.xlu0.b32.cont [9/16] 0.0, 128
    %1993 = vxpose.xlu0.b32.cont [10/16] 0.0, 128
    %1994 = vxpose.xlu0.b32.cont [11/16] 0.0, 128
    %1995 = vxpose.xlu0.b32.cont [12/16] 0.0, 128
    %1996 = vxpose.xlu0.b32.cont [13/16] 0.0, 128
    %1997 = vxpose.xlu0.b32.cont [14/16] 0.0, 128
    %1998 = vxpose.xlu0.b32.cont [15/16] 0.0, 128
    %1999 = vxpose.xlu0.b32.end [16/16] 0.0, 128
    %v2000 = vpop.trf.xlu0
    %v2001 = vpop.trf.xlu0
    %v2002 = vpop.trf.xlu0
    %v2003 = vpop.trf.xlu0
    %v2004 = vpop.trf.xlu0
    %v2005 = vpop.trf.xlu0
    %v2006 = vpop.trf.xlu0
    %v2007 = vpop.trf.xlu0
    %v2008 = vpop.trf.xlu0
    %v2009 = vpop.trf.xlu0
    %v2010 = vpop.trf.xlu0
    %v2011 = vpop.trf.xlu0
    %v2012 = vpop.trf.xlu0
    %v2013 = vpop.trf.xlu0
    %v2014 = vpop.trf.xlu0
    %v2015 = vpop.trf.xlu0
    %2016 = vxpose.xlu0.b32.start [1/16] %v1723, 128
    %2017 = vxpose.xlu0.b32.cont [2/16] 0.0, 128
    %2018 = vxpose.xlu0.b32.cont [3/16] 0.0, 128
    %2019 = vxpose.xlu0.b32.cont [4/16] 0.0, 128
    %2020 = vxpose.xlu0.b32.cont [5/16] 0.0, 128
    %2021 = vxpose.xlu0.b32.cont [6/16] 0.0, 128
    %2022 = vxpose.xlu0.b32.cont [7/16] 0.0, 128
    %2023 = vxpose.xlu0.b32.cont [8/16] 0.0, 128
    %2024 = vxpose.xlu0.b32.cont [9/16] 0.0, 128
    %2025 = vxpose.xlu0.b32.cont [10/16] 0.0, 128
    %2026 = vxpose.xlu0.b32.cont [11/16] 0.0, 128
    %2027 = vxpose.xlu0.b32.cont [12/16] 0.0, 128
    %2028 = vxpose.xlu0.b32.cont [13/16] 0.0, 128
    %2029 = vxpose.xlu0.b32.cont [14/16] 0.0, 128
    %2030 = vxpose.xlu0.b32.cont [15/16] 0.0, 128
    %2031 = vxpose.xlu0.b32.end [16/16] 0.0, 128
    %v2032 = vpop.trf.xlu0
    %v2033 = vpop.trf.xlu0
    %v2034 = vpop.trf.xlu0
    %v2035 = vpop.trf.xlu0
    %v2036 = vpop.trf.xlu0
    %v2037 = vpop.trf.xlu0
    %v2038 = vpop.trf.xlu0
    %v2039 = vpop.trf.xlu0
    %v2040 = vpop.trf.xlu0
    %v2041 = vpop.trf.xlu0
    %v2042 = vpop.trf.xlu0
    %v2043 = vpop.trf.xlu0
    %v2044 = vpop.trf.xlu0
    %v2045 = vpop.trf.xlu0
    %v2046 = vpop.trf.xlu0
    %v2047 = vpop.trf.xlu0
    %2048 = vxpose.xlu0.b32.start [1/16] %v1764, 128
    %2049 = vxpose.xlu0.b32.cont [2/16] 0.0, 128
    %2050 = vxpose.xlu0.b32.cont [3/16] 0.0, 128
    %2051 = vxpose.xlu0.b32.cont [4/16] 0.0, 128
    %2052 = vxpose.xlu0.b32.cont [5/16] 0.0, 128
    %2053 = vxpose.xlu0.b32.cont [6/16] 0.0, 128
    %2054 = vxpose.xlu0.b32.cont [7/16] 0.0, 128
    %2055 = vxpose.xlu0.b32.cont [8/16] 0.0, 128
    %2056 = vxpose.xlu0.b32.cont [9/16] 0.0, 128
    %2057 = vxpose.xlu0.b32.cont [10/16] 0.0, 128
    %2058 = vxpose.xlu0.b32.cont [11/16] 0.0, 128
    %2059 = vxpose.xlu0.b32.cont [12/16] 0.0, 128
    %2060 = vxpose.xlu0.b32.cont [13/16] 0.0, 128
    %2061 = vxpose.xlu0.b32.cont [14/16] 0.0, 128
    %2062 = vxpose.xlu0.b32.cont [15/16] 0.0, 128
    %2063 = vxpose.xlu0.b32.end [16/16] 0.0, 128
    %v2064 = vpop.trf.xlu0
    %v2065 = vpop.trf.xlu0
    %v2066 = vpop.trf.xlu0
    %v2067 = vpop.trf.xlu0
    %v2068 = vpop.trf.xlu0
    %v2069 = vpop.trf.xlu0
    %v2070 = vpop.trf.xlu0
    %v2071 = vpop.trf.xlu0
    %v2072 = vpop.trf.xlu0
    %v2073 = vpop.trf.xlu0
    %v2074 = vpop.trf.xlu0
    %v2075 = vpop.trf.xlu0
    %v2076 = vpop.trf.xlu0
    %v2077 = vpop.trf.xlu0
    %v2078 = vpop.trf.xlu0
    %v2079 = vpop.trf.xlu0
    %2080 = vxpose.xlu0.b32.start [1/16] %v1788, 128
    %2081 = vxpose.xlu0.b32.cont [2/16] 0.0, 128
    %2082 = vxpose.xlu0.b32.cont [3/16] 0.0, 128
    %2083 = vxpose.xlu0.b32.cont [4/16] 0.0, 128
    %2084 = vxpose.xlu0.b32.cont [5/16] 0.0, 128
    %2085 = vxpose.xlu0.b32.cont [6/16] 0.0, 128
    %2086 = vxpose.xlu0.b32.cont [7/16] 0.0, 128
    %2087 = vxpose.xlu0.b32.cont [8/16] 0.0, 128
    %2088 = vxpose.xlu0.b32.cont [9/16] 0.0, 128
    %2089 = vxpose.xlu0.b32.cont [10/16] 0.0, 128
    %2090 = vxpose.xlu0.b32.cont [11/16] 0.0, 128
    %2091 = vxpose.xlu0.b32.cont [12/16] 0.0, 128
    %2092 = vxpose.xlu0.b32.cont [13/16] 0.0, 128
    %2093 = vxpose.xlu0.b32.cont [14/16] 0.0, 128
    %2094 = vxpose.xlu0.b32.cont [15/16] 0.0, 128
    %2095 = vxpose.xlu0.b32.end [16/16] 0.0, 128
    %v2096 = vpop.trf.xlu0
    %v2097 = vpop.trf.xlu0
    %v2098 = vpop.trf.xlu0
    %v2099 = vpop.trf.xlu0
    %v2100 = vpop.trf.xlu0
    %v2101 = vpop.trf.xlu0
    %v2102 = vpop.trf.xlu0
    %v2103 = vpop.trf.xlu0
    %v2104 = vpop.trf.xlu0
    %v2105 = vpop.trf.xlu0
    %v2106 = vpop.trf.xlu0
    %v2107 = vpop.trf.xlu0
    %v2108 = vpop.trf.xlu0
    %v2109 = vpop.trf.xlu0
    %v2110 = vpop.trf.xlu0
    %v2111 = vpop.trf.xlu0
    %2112 = vxpose.xlu0.b32.start [1/16] %v1771, 128
    %2113 = vxpose.xlu0.b32.cont [2/16] 0.0, 128
    %2114 = vxpose.xlu0.b32.cont [3/16] 0.0, 128
    %2115 = vxpose.xlu0.b32.cont [4/16] 0.0, 128
    %2116 = vxpose.xlu0.b32.cont [5/16] 0.0, 128
    %2117 = vxpose.xlu0.b32.cont [6/16] 0.0, 128
    %2118 = vxpose.xlu0.b32.cont [7/16] 0.0, 128
    %2119 = vxpose.xlu0.b32.cont [8/16] 0.0, 128
    %2120 = vxpose.xlu0.b32.cont [9/16] 0.0, 128
    %2121 = vxpose.xlu0.b32.cont [10/16] 0.0, 128
    %2122 = vxpose.xlu0.b32.cont [11/16] 0.0, 128
    %2123 = vxpose.xlu0.b32.cont [12/16] 0.0, 128
    %2124 = vxpose.xlu0.b32.cont [13/16] 0.0, 128
    %2125 = vxpose.xlu0.b32.cont [14/16] 0.0, 128
    %2126 = vxpose.xlu0.b32.cont [15/16] 0.0, 128
    %2127 = vxpose.xlu0.b32.end [16/16] 0.0, 128
    %v2128 = vpop.trf.xlu0
    %v2129 = vpop.trf.xlu0
    %v2130 = vpop.trf.xlu0
    %v2131 = vpop.trf.xlu0
    %v2132 = vpop.trf.xlu0
    %v2133 = vpop.trf.xlu0
    %v2134 = vpop.trf.xlu0
    %v2135 = vpop.trf.xlu0
    %v2136 = vpop.trf.xlu0
    %v2137 = vpop.trf.xlu0
    %v2138 = vpop.trf.xlu0
    %v2139 = vpop.trf.xlu0
    %v2140 = vpop.trf.xlu0
    %v2141 = vpop.trf.xlu0
    %v2142 = vpop.trf.xlu0
    %v2143 = vpop.trf.xlu0
    %2144 = vxpose.xlu0.b32.start [1/16] %v1789, 128
    %2145 = vxpose.xlu0.b32.cont [2/16] 0.0, 128
    %2146 = vxpose.xlu0.b32.cont [3/16] 0.0, 128
    %2147 = vxpose.xlu0.b32.cont [4/16] 0.0, 128
    %2148 = vxpose.xlu0.b32.cont [5/16] 0.0, 128
    %2149 = vxpose.xlu0.b32.cont [6/16] 0.0, 128
    %2150 = vxpose.xlu0.b32.cont [7/16] 0.0, 128
    %2151 = vxpose.xlu0.b32.cont [8/16] 0.0, 128
    %2152 = vxpose.xlu0.b32.cont [9/16] 0.0, 128
    %2153 = vxpose.xlu0.b32.cont [10/16] 0.0, 128
    %2154 = vxpose.xlu0.b32.cont [11/16] 0.0, 128
    %2155 = vxpose.xlu0.b32.cont [12/16] 0.0, 128
    %2156 = vxpose.xlu0.b32.cont [13/16] 0.0, 128
    %2157 = vxpose.xlu0.b32.cont [14/16] 0.0, 128
    %2158 = vxpose.xlu0.b32.cont [15/16] 0.0, 128
    %2159 = vxpose.xlu0.b32.end [16/16] 0.0, 128
    %v2160 = vpop.trf.xlu0
    %v2161 = vpop.trf.xlu0
    %v2162 = vpop.trf.xlu0
    %v2163 = vpop.trf.xlu0
    %v2164 = vpop.trf.xlu0
    %v2165 = vpop.trf.xlu0
    %v2166 = vpop.trf.xlu0
    %v2167 = vpop.trf.xlu0
    %v2168 = vpop.trf.xlu0
    %v2169 = vpop.trf.xlu0
    %v2170 = vpop.trf.xlu0
    %v2171 = vpop.trf.xlu0
    %v2172 = vpop.trf.xlu0
    %v2173 = vpop.trf.xlu0
    %v2174 = vpop.trf.xlu0
    %v2175 = vpop.trf.xlu0
    %2176 = vxpose.xlu0.b32.start [1/16] %v1780, 128
    %2177 = vxpose.xlu0.b32.cont [2/16] 0.0, 128
    %2178 = vxpose.xlu0.b32.cont [3/16] 0.0, 128
    %2179 = vxpose.xlu0.b32.cont [4/16] 0.0, 128
    %2180 = vxpose.xlu0.b32.cont [5/16] 0.0, 128
    %2181 = vxpose.xlu0.b32.cont [6/16] 0.0, 128
    %2182 = vxpose.xlu0.b32.cont [7/16] 0.0, 128
    %2183 = vxpose.xlu0.b32.cont [8/16] 0.0, 128
    %2184 = vxpose.xlu0.b32.cont [9/16] 0.0, 128
    %2185 = vxpose.xlu0.b32.cont [10/16] 0.0, 128
    %2186 = vxpose.xlu0.b32.cont [11/16] 0.0, 128
    %2187 = vxpose.xlu0.b32.cont [12/16] 0.0, 128
    %2188 = vxpose.xlu0.b32.cont [13/16] 0.0, 128
    %2189 = vxpose.xlu0.b32.cont [14/16] 0.0, 128
    %2190 = vxpose.xlu0.b32.cont [15/16] 0.0, 128
    %2191 = vxpose.xlu0.b32.end [16/16] 0.0, 128
    %v2192 = vpop.trf.xlu0
    %v2193 = vpop.trf.xlu0
    %v2194 = vpop.trf.xlu0
    %v2195 = vpop.trf.xlu0
    %v2196 = vpop.trf.xlu0
    %v2197 = vpop.trf.xlu0
    %v2198 = vpop.trf.xlu0
    %v2199 = vpop.trf.xlu0
    %v2200 = vpop.trf.xlu0
    %v2201 = vpop.trf.xlu0
    %v2202 = vpop.trf.xlu0
    %v2203 = vpop.trf.xlu0
    %v2204 = vpop.trf.xlu0
    %v2205 = vpop.trf.xlu0
    %v2206 = vpop.trf.xlu0
    %v2207 = vpop.trf.xlu0
    %2208 = vxpose.xlu0.b32.start [1/16] %v1790, 128
    %2209 = vxpose.xlu0.b32.cont [2/16] 0.0, 128
    %2210 = vxpose.xlu0.b32.cont [3/16] 0.0, 128
    %2211 = vxpose.xlu0.b32.cont [4/16] 0.0, 128
    %2212 = vxpose.xlu0.b32.cont [5/16] 0.0, 128
    %2213 = vxpose.xlu0.b32.cont [6/16] 0.0, 128
    %2214 = vxpose.xlu0.b32.cont [7/16] 0.0, 128
    %2215 = vxpose.xlu0.b32.cont [8/16] 0.0, 128
    %2216 = vxpose.xlu0.b32.cont [9/16] 0.0, 128
    %2217 = vxpose.xlu0.b32.cont [10/16] 0.0, 128
    %2218 = vxpose.xlu0.b32.cont [11/16] 0.0, 128
    %2219 = vxpose.xlu0.b32.cont [12/16] 0.0, 128
    %2220 = vxpose.xlu0.b32.cont [13/16] 0.0, 128
    %2221 = vxpose.xlu0.b32.cont [14/16] 0.0, 128
    %2222 = vxpose.xlu0.b32.cont [15/16] 0.0, 128
    %2223 = vxpose.xlu0.b32.end [16/16] 0.0, 128
    %v2224 = vpop.trf.xlu0
    %v2225 = vpop.trf.xlu0
    %v2226 = vpop.trf.xlu0
    %v2227 = vpop.trf.xlu0
    %v2228 = vpop.trf.xlu0
    %v2229 = vpop.trf.xlu0
    %v2230 = vpop.trf.xlu0
    %v2231 = vpop.trf.xlu0
    %v2232 = vpop.trf.xlu0
    %v2233 = vpop.trf.xlu0
    %v2234 = vpop.trf.xlu0
    %v2235 = vpop.trf.xlu0
    %v2236 = vpop.trf.xlu0
    %v2237 = vpop.trf.xlu0
    %v2238 = vpop.trf.xlu0
    %v2239 = vpop.trf.xlu0
    %2240 = vxpose.xlu0.b32.start [1/16] %v1787, 128
    %2241 = vxpose.xlu0.b32.cont [2/16] 0.0, 128
    %2242 = vxpose.xlu0.b32.cont [3/16] 0.0, 128
    %2243 = vxpose.xlu0.b32.cont [4/16] 0.0, 128
    %2244 = vxpose.xlu0.b32.cont [5/16] 0.0, 128
    %2245 = vxpose.xlu0.b32.cont [6/16] 0.0, 128
    %2246 = vxpose.xlu0.b32.cont [7/16] 0.0, 128
    %2247 = vxpose.xlu0.b32.cont [8/16] 0.0, 128
    %2248 = vxpose.xlu0.b32.cont [9/16] 0.0, 128
    %2249 = vxpose.xlu0.b32.cont [10/16] 0.0, 128
    %2250 = vxpose.xlu0.b32.cont [11/16] 0.0, 128
    %2251 = vxpose.xlu0.b32.cont [12/16] 0.0, 128
    %2252 = vxpose.xlu0.b32.cont [13/16] 0.0, 128
    %2253 = vxpose.xlu0.b32.cont [14/16] 0.0, 128
    %2254 = vxpose.xlu0.b32.cont [15/16] 0.0, 128
    %2255 = vxpose.xlu0.b32.end [16/16] 0.0, 128
    %v2256 = vpop.trf.xlu0
    %v2257 = vpop.trf.xlu0
    %v2258 = vpop.trf.xlu0
    %v2259 = vpop.trf.xlu0
    %v2260 = vpop.trf.xlu0
    %v2261 = vpop.trf.xlu0
    %v2262 = vpop.trf.xlu0
    %v2263 = vpop.trf.xlu0
    %v2264 = vpop.trf.xlu0
    %v2265 = vpop.trf.xlu0
    %v2266 = vpop.trf.xlu0
    %v2267 = vpop.trf.xlu0
    %v2268 = vpop.trf.xlu0
    %v2269 = vpop.trf.xlu0
    %v2270 = vpop.trf.xlu0
    %v2271 = vpop.trf.xlu0
    %2272 = vxpose.xlu0.b32.start [1/16] %v1791, 128
    %2273 = vxpose.xlu0.b32.cont [2/16] 0.0, 128
    %2274 = vxpose.xlu0.b32.cont [3/16] 0.0, 128
    %2275 = vxpose.xlu0.b32.cont [4/16] 0.0, 128
    %2276 = vxpose.xlu0.b32.cont [5/16] 0.0, 128
    %2277 = vxpose.xlu0.b32.cont [6/16] 0.0, 128
    %2278 = vxpose.xlu0.b32.cont [7/16] 0.0, 128
    %2279 = vxpose.xlu0.b32.cont [8/16] 0.0, 128
    %2280 = vxpose.xlu0.b32.cont [9/16] 0.0, 128
    %2281 = vxpose.xlu0.b32.cont [10/16] 0.0, 128
    %2282 = vxpose.xlu0.b32.cont [11/16] 0.0, 128
    %2283 = vxpose.xlu0.b32.cont [12/16] 0.0, 128
    %2284 = vxpose.xlu0.b32.cont [13/16] 0.0, 128
    %2285 = vxpose.xlu0.b32.cont [14/16] 0.0, 128
    %2286 = vxpose.xlu0.b32.cont [15/16] 0.0, 128
    %2287 = vxpose.xlu0.b32.end [16/16] 0.0, 128
    %v2288 = vpop.trf.xlu0
    %v2289 = vpop.trf.xlu0
    %v2290 = vpop.trf.xlu0
    %v2291 = vpop.trf.xlu0
    %v2292 = vpop.trf.xlu0
    %v2293 = vpop.trf.xlu0
    %v2294 = vpop.trf.xlu0
    %v2295 = vpop.trf.xlu0
    %v2296 = vpop.trf.xlu0
    %v2297 = vpop.trf.xlu0
    %v2298 = vpop.trf.xlu0
    %v2299 = vpop.trf.xlu0
    %v2300 = vpop.trf.xlu0
    %v2301 = vpop.trf.xlu0
    %v2302 = vpop.trf.xlu0
    %v2303 = vpop.trf.xlu0
    %v2304 = vcombine.low %v1808, %v1872
    %v2305 = vcombine.high %v1808, %v1872
    %v2307 = vunpack.c.l.s4 1983009808
    %v2308 = vunpack.c.0.s8 %v2307
    %v2309 = vlaneseq
    %v2310 = vshrl.u32 %v2309, 7
    %v2311 = vsub.s32 %v2308, %v2310
    %v2312 = vrot.slane %v2304, %v2311
    %v2314 = vunpack.c.l.s4 1983009808
    %v2315 = vunpack.c.0.s8 %v2314
    %v2316 = vlaneseq
    %v2317 = vshrl.u32 %v2316, 7
    %v2318 = vsub.s32 %v2315, %v2317
    %v2319 = vrot.slane %v2305, %v2318
    %v2320 = vcombine.low %v1840, %v1904
    %v2321 = vcombine.high %v1840, %v1904
    %v2323 = vunpack.c.l.s4 1983009808
    %v2324 = vunpack.c.0.s8 %v2323
    %v2325 = vlaneseq
    %v2326 = vshrl.u32 %v2325, 7
    %v2327 = vsub.s32 %v2324, %v2326
    %v2328 = vrot.slane %v2320, %v2327
    %v2330 = vunpack.c.l.s4 1983009808
    %v2331 = vunpack.c.0.s8 %v2330
    %v2332 = vlaneseq
    %v2333 = vshrl.u32 %v2332, 7
    %v2334 = vsub.s32 %v2331, %v2333
    %v2335 = vrot.slane %v2321, %v2334
    %v2336 = vcombine.low %v1936, %v2000
    %v2337 = vcombine.high %v1936, %v2000
    %v2339 = vunpack.c.l.s4 1983009808
    %v2340 = vunpack.c.0.s8 %v2339
    %v2341 = vlaneseq
    %v2342 = vshrl.u32 %v2341, 7
    %v2343 = vsub.s32 %v2340, %v2342
    %v2344 = vrot.slane %v2336, %v2343
    %v2346 = vunpack.c.l.s4 1983009808
    %v2347 = vunpack.c.0.s8 %v2346
    %v2348 = vlaneseq
    %v2349 = vshrl.u32 %v2348, 7
    %v2350 = vsub.s32 %v2347, %v2349
    %v2351 = vrot.slane %v2337, %v2350
    %v2352 = vcombine.low %v1968, %v2032
    %v2353 = vcombine.high %v1968, %v2032
    %v2355 = vunpack.c.l.s4 1983009808
    %v2356 = vunpack.c.0.s8 %v2355
    %v2357 = vlaneseq
    %v2358 = vshrl.u32 %v2357, 7
    %v2359 = vsub.s32 %v2356, %v2358
    %v2360 = vrot.slane %v2352, %v2359
    %v2362 = vunpack.c.l.s4 1983009808
    %v2363 = vunpack.c.0.s8 %v2362
    %v2364 = vlaneseq
    %v2365 = vshrl.u32 %v2364, 7
    %v2366 = vsub.s32 %v2363, %v2365
    %v2367 = vrot.slane %v2353, %v2366
    %v2368 = vcombine.low %v2312, %v2328
    %v2369 = vcombine.high %v2312, %v2328
    %v2371 = vunpack.c.l.s4 1934713408
    %v2372 = vunpack.c.0.s8 %v2371
    %v2373 = vlaneseq
    %v2374 = vshrl.u32 %v2373, 7
    %v2375 = vsub.s32 %v2372, %v2374
    %v2376 = vrot.slane %v2368, %v2375
    %v2378 = vunpack.c.l.s4 1934713408
    %v2379 = vunpack.c.0.s8 %v2378
    %v2380 = vlaneseq
    %v2381 = vshrl.u32 %v2380, 7
    %v2382 = vsub.s32 %v2379, %v2381
    %v2383 = vrot.slane %v2369, %v2382
    %v2384 = vcombine.low %v2319, %v2335
    %v2385 = vcombine.high %v2319, %v2335
    %v2387 = vunpack.c.l.s4 1934713408
    %v2388 = vunpack.c.0.s8 %v2387
    %v2389 = vlaneseq
    %v2390 = vshrl.u32 %v2389, 7
    %v2391 = vsub.s32 %v2388, %v2390
    %v2392 = vrot.slane %v2384, %v2391
    %v2394 = vunpack.c.l.s4 1934713408
    %v2395 = vunpack.c.0.s8 %v2394
    %v2396 = vlaneseq
    %v2397 = vshrl.u32 %v2396, 7
    %v2398 = vsub.s32 %v2395, %v2397
    %v2399 = vrot.slane %v2385, %v2398
    %v2400 = vcombine.low %v2344, %v2360
    %v2401 = vcombine.high %v2344, %v2360
    %v2403 = vunpack.c.l.s4 1934713408
    %v2404 = vunpack.c.0.s8 %v2403
    %v2405 = vlaneseq
    %v2406 = vshrl.u32 %v2405, 7
    %v2407 = vsub.s32 %v2404, %v2406
    %v2408 = vrot.slane %v2400, %v2407
    %v2410 = vunpack.c.l.s4 1934713408
    %v2411 = vunpack.c.0.s8 %v2410
    %v2412 = vlaneseq
    %v2413 = vshrl.u32 %v2412, 7
    %v2414 = vsub.s32 %v2411, %v2413
    %v2415 = vrot.slane %v2401, %v2414
    %v2416 = vcombine.low %v2351, %v2367
    %v2417 = vcombine.high %v2351, %v2367
    %v2419 = vunpack.c.l.s4 1934713408
    %v2420 = vunpack.c.0.s8 %v2419
    %v2421 = vlaneseq
    %v2422 = vshrl.u32 %v2421, 7
    %v2423 = vsub.s32 %v2420, %v2422
    %v2424 = vrot.slane %v2416, %v2423
    %v2426 = vunpack.c.l.s4 1934713408
    %v2427 = vunpack.c.0.s8 %v2426
    %v2428 = vlaneseq
    %v2429 = vshrl.u32 %v2428, 7
    %v2430 = vsub.s32 %v2427, %v2429
    %v2431 = vrot.slane %v2417, %v2430
    %v2432 = vcombine.low %v2376, %v2408
    %v2433 = vcombine.high %v2376, %v2408
    %v2434 = vcombine.low %v2383, %v2415
    %v2435 = vcombine.high %v2383, %v2415
    %v2436 = vcombine.low %v2392, %v2424
    %v2437 = vcombine.high %v2392, %v2424
    %v2438 = vcombine.low %v2399, %v2431
    %v2439 = vcombine.high %v2399, %v2431
    %v2440 = vcombine.low %v2064, %v2128
    %v2441 = vcombine.high %v2064, %v2128
    %v2443 = vunpack.c.l.s4 1983009808
    %v2444 = vunpack.c.0.s8 %v2443
    %v2445 = vlaneseq
    %v2446 = vshrl.u32 %v2445, 7
    %v2447 = vsub.s32 %v2444, %v2446
    %v2448 = vrot.slane %v2440, %v2447
    %v2450 = vunpack.c.l.s4 1983009808
    %v2451 = vunpack.c.0.s8 %v2450
    %v2452 = vlaneseq
    %v2453 = vshrl.u32 %v2452, 7
    %v2454 = vsub.s32 %v2451, %v2453
    %v2455 = vrot.slane %v2441, %v2454
    %v2456 = vcombine.low %v2096, %v2160
    %v2457 = vcombine.high %v2096, %v2160
    %v2459 = vunpack.c.l.s4 1983009808
    %v2460 = vunpack.c.0.s8 %v2459
    %v2461 = vlaneseq
    %v2462 = vshrl.u32 %v2461, 7
    %v2463 = vsub.s32 %v2460, %v2462
    %v2464 = vrot.slane %v2456, %v2463
    %v2466 = vunpack.c.l.s4 1983009808
    %v2467 = vunpack.c.0.s8 %v2466
    %v2468 = vlaneseq
    %v2469 = vshrl.u32 %v2468, 7
    %v2470 = vsub.s32 %v2467, %v2469
    %v2471 = vrot.slane %v2457, %v2470
    %v2472 = vcombine.low %v2192, %v2256
    %v2473 = vcombine.high %v2192, %v2256
    %v2475 = vunpack.c.l.s4 1983009808
    %v2476 = vunpack.c.0.s8 %v2475
    %v2477 = vlaneseq
    %v2478 = vshrl.u32 %v2477, 7
    %v2479 = vsub.s32 %v2476, %v2478
    %v2480 = vrot.slane %v2472, %v2479
    %v2482 = vunpack.c.l.s4 1983009808
    %v2483 = vunpack.c.0.s8 %v2482
    %v2484 = vlaneseq
    %v2485 = vshrl.u32 %v2484, 7
    %v2486 = vsub.s32 %v2483, %v2485
    %v2487 = vrot.slane %v2473, %v2486
    %v2488 = vcombine.low %v2224, %v2288
    %v2489 = vcombine.high %v2224, %v2288
    %v2491 = vunpack.c.l.s4 1983009808
    %v2492 = vunpack.c.0.s8 %v2491
    %v2493 = vlaneseq
    %v2494 = vshrl.u32 %v2493, 7
    %v2495 = vsub.s32 %v2492, %v2494
    %v2496 = vrot.slane %v2488, %v2495
    %v2498 = vunpack.c.l.s4 1983009808
    %v2499 = vunpack.c.0.s8 %v2498
    %v2500 = vlaneseq
    %v2501 = vshrl.u32 %v2500, 7
    %v2502 = vsub.s32 %v2499, %v2501
    %v2503 = vrot.slane %v2489, %v2502
    %v2504 = vcombine.low %v2448, %v2464
    %v2505 = vcombine.high %v2448, %v2464
    %v2507 = vunpack.c.l.s4 1934713408
    %v2508 = vunpack.c.0.s8 %v2507
    %v2509 = vlaneseq
    %v2510 = vshrl.u32 %v2509, 7
    %v2511 = vsub.s32 %v2508, %v2510
    %v2512 = vrot.slane %v2504, %v2511
    %v2514 = vunpack.c.l.s4 1934713408
    %v2515 = vunpack.c.0.s8 %v2514
    %v2516 = vlaneseq
    %v2517 = vshrl.u32 %v2516, 7
    %v2518 = vsub.s32 %v2515, %v2517
    %v2519 = vrot.slane %v2505, %v2518
    %v2520 = vcombine.low %v2455, %v2471
    %v2521 = vcombine.high %v2455, %v2471
    %v2523 = vunpack.c.l.s4 1934713408
    %v2524 = vunpack.c.0.s8 %v2523
    %v2525 = vlaneseq
    %v2526 = vshrl.u32 %v2525, 7
    %v2527 = vsub.s32 %v2524, %v2526
    %v2528 = vrot.slane %v2520, %v2527
    %v2530 = vunpack.c.l.s4 1934713408
    %v2531 = vunpack.c.0.s8 %v2530
    %v2532 = vlaneseq
    %v2533 = vshrl.u32 %v2532, 7
    %v2534 = vsub.s32 %v2531, %v2533
    %v2535 = vrot.slane %v2521, %v2534
    %v2536 = vcombine.low %v2480, %v2496
    %v2537 = vcombine.high %v2480, %v2496
    %v2539 = vunpack.c.l.s4 1934713408
    %v2540 = vunpack.c.0.s8 %v2539
    %v2541 = vlaneseq
    %v2542 = vshrl.u32 %v2541, 7
    %v2543 = vsub.s32 %v2540, %v2542
    %v2544 = vrot.slane %v2536, %v2543
    %v2546 = vunpack.c.l.s4 1934713408
    %v2547 = vunpack.c.0.s8 %v2546
    %v2548 = vlaneseq
    %v2549 = vshrl.u32 %v2548, 7
    %v2550 = vsub.s32 %v2547, %v2549
    %v2551 = vrot.slane %v2537, %v2550
    %v2552 = vcombine.low %v2487, %v2503
    %v2553 = vcombine.high %v2487, %v2503
    %v2555 = vunpack.c.l.s4 1934713408
    %v2556 = vunpack.c.0.s8 %v2555
    %v2557 = vlaneseq
    %v2558 = vshrl.u32 %v2557, 7
    %v2559 = vsub.s32 %v2556, %v2558
    %v2560 = vrot.slane %v2552, %v2559
    %v2562 = vunpack.c.l.s4 1934713408
    %v2563 = vunpack.c.0.s8 %v2562
    %v2564 = vlaneseq
    %v2565 = vshrl.u32 %v2564, 7
    %v2566 = vsub.s32 %v2563, %v2565
    %v2567 = vrot.slane %v2553, %v2566
    %v2568 = vcombine.low %v2512, %v2544
    %v2569 = vcombine.high %v2512, %v2544
    %v2570 = vcombine.low %v2519, %v2551
    %v2571 = vcombine.high %v2519, %v2551
    %v2572 = vcombine.low %v2528, %v2560
    %v2573 = vcombine.high %v2528, %v2560
    %v2574 = vcombine.low %v2535, %v2567
    %v2575 = vcombine.high %v2535, %v2567
    %v2576 = vcombine.low %v1809, %v1873
    %v2577 = vcombine.high %v1809, %v1873
    %v2579 = vunpack.c.l.s4 1983009808
    %v2580 = vunpack.c.0.s8 %v2579
    %v2581 = vlaneseq
    %v2582 = vshrl.u32 %v2581, 7
    %v2583 = vsub.s32 %v2580, %v2582
    %v2584 = vrot.slane %v2576, %v2583
    %v2586 = vunpack.c.l.s4 1983009808
    %v2587 = vunpack.c.0.s8 %v2586
    %v2588 = vlaneseq
    %v2589 = vshrl.u32 %v2588, 7
    %v2590 = vsub.s32 %v2587, %v2589
    %v2591 = vrot.slane %v2577, %v2590
    %v2592 = vcombine.low %v1841, %v1905
    %v2593 = vcombine.high %v1841, %v1905
    %v2595 = vunpack.c.l.s4 1983009808
    %v2596 = vunpack.c.0.s8 %v2595
    %v2597 = vlaneseq
    %v2598 = vshrl.u32 %v2597, 7
    %v2599 = vsub.s32 %v2596, %v2598
    %v2600 = vrot.slane %v2592, %v2599
    %v2602 = vunpack.c.l.s4 1983009808
    %v2603 = vunpack.c.0.s8 %v2602
    %v2604 = vlaneseq
    %v2605 = vshrl.u32 %v2604, 7
    %v2606 = vsub.s32 %v2603, %v2605
    %v2607 = vrot.slane %v2593, %v2606
    %v2608 = vcombine.low %v1937, %v2001
    %v2609 = vcombine.high %v1937, %v2001
    %v2611 = vunpack.c.l.s4 1983009808
    %v2612 = vunpack.c.0.s8 %v2611
    %v2613 = vlaneseq
    %v2614 = vshrl.u32 %v2613, 7
    %v2615 = vsub.s32 %v2612, %v2614
    %v2616 = vrot.slane %v2608, %v2615
    %v2618 = vunpack.c.l.s4 1983009808
    %v2619 = vunpack.c.0.s8 %v2618
    %v2620 = vlaneseq
    %v2621 = vshrl.u32 %v2620, 7
    %v2622 = vsub.s32 %v2619, %v2621
    %v2623 = vrot.slane %v2609, %v2622
    %v2624 = vcombine.low %v1969, %v2033
    %v2625 = vcombine.high %v1969, %v2033
    %v2627 = vunpack.c.l.s4 1983009808
    %v2628 = vunpack.c.0.s8 %v2627
    %v2629 = vlaneseq
    %v2630 = vshrl.u32 %v2629, 7
    %v2631 = vsub.s32 %v2628, %v2630
    %v2632 = vrot.slane %v2624, %v2631
    %v2634 = vunpack.c.l.s4 1983009808
    %v2635 = vunpack.c.0.s8 %v2634
    %v2636 = vlaneseq
    %v2637 = vshrl.u32 %v2636, 7
    %v2638 = vsub.s32 %v2635, %v2637
    %v2639 = vrot.slane %v2625, %v2638
    %v2640 = vcombine.low %v2584, %v2600
    %v2641 = vcombine.high %v2584, %v2600
    %v2643 = vunpack.c.l.s4 1934713408
    %v2644 = vunpack.c.0.s8 %v2643
    %v2645 = vlaneseq
    %v2646 = vshrl.u32 %v2645, 7
    %v2647 = vsub.s32 %v2644, %v2646
    %v2648 = vrot.slane %v2640, %v2647
    %v2650 = vunpack.c.l.s4 1934713408
    %v2651 = vunpack.c.0.s8 %v2650
    %v2652 = vlaneseq
    %v2653 = vshrl.u32 %v2652, 7
    %v2654 = vsub.s32 %v2651, %v2653
    %v2655 = vrot.slane %v2641, %v2654
    %v2656 = vcombine.low %v2591, %v2607
    %v2657 = vcombine.high %v2591, %v2607
    %v2659 = vunpack.c.l.s4 1934713408
    %v2660 = vunpack.c.0.s8 %v2659
    %v2661 = vlaneseq
    %v2662 = vshrl.u32 %v2661, 7
    %v2663 = vsub.s32 %v2660, %v2662
    %v2664 = vrot.slane %v2656, %v2663
    %v2666 = vunpack.c.l.s4 1934713408
    %v2667 = vunpack.c.0.s8 %v2666
    %v2668 = vlaneseq
    %v2669 = vshrl.u32 %v2668, 7
    %v2670 = vsub.s32 %v2667, %v2669
    %v2671 = vrot.slane %v2657, %v2670
    %v2672 = vcombine.low %v2616, %v2632
    %v2673 = vcombine.high %v2616, %v2632
    %v2675 = vunpack.c.l.s4 1934713408
    %v2676 = vunpack.c.0.s8 %v2675
    %v2677 = vlaneseq
    %v2678 = vshrl.u32 %v2677, 7
    %v2679 = vsub.s32 %v2676, %v2678
    %v2680 = vrot.slane %v2672, %v2679
    %v2682 = vunpack.c.l.s4 1934713408
    %v2683 = vunpack.c.0.s8 %v2682
    %v2684 = vlaneseq
    %v2685 = vshrl.u32 %v2684, 7
    %v2686 = vsub.s32 %v2683, %v2685
    %v2687 = vrot.slane %v2673, %v2686
    %v2688 = vcombine.low %v2623, %v2639
    %v2689 = vcombine.high %v2623, %v2639
    %v2691 = vunpack.c.l.s4 1934713408
    %v2692 = vunpack.c.0.s8 %v2691
    %v2693 = vlaneseq
    %v2694 = vshrl.u32 %v2693, 7
    %v2695 = vsub.s32 %v2692, %v2694
    %v2696 = vrot.slane %v2688, %v2695
    %v2698 = vunpack.c.l.s4 1934713408
    %v2699 = vunpack.c.0.s8 %v2698
    %v2700 = vlaneseq
    %v2701 = vshrl.u32 %v2700, 7
    %v2702 = vsub.s32 %v2699, %v2701
    %v2703 = vrot.slane %v2689, %v2702
    %v2704 = vcombine.low %v2648, %v2680
    %v2705 = vcombine.high %v2648, %v2680
    %v2706 = vcombine.low %v2655, %v2687
    %v2707 = vcombine.high %v2655, %v2687
    %v2708 = vcombine.low %v2664, %v2696
    %v2709 = vcombine.high %v2664, %v2696
    %v2710 = vcombine.low %v2671, %v2703
    %v2711 = vcombine.high %v2671, %v2703
    %v2712 = vcombine.low %v2065, %v2129
    %v2713 = vcombine.high %v2065, %v2129
    %v2715 = vunpack.c.l.s4 1983009808
    %v2716 = vunpack.c.0.s8 %v2715
    %v2717 = vlaneseq
    %v2718 = vshrl.u32 %v2717, 7
    %v2719 = vsub.s32 %v2716, %v2718
    %v2720 = vrot.slane %v2712, %v2719
    %v2722 = vunpack.c.l.s4 1983009808
    %v2723 = vunpack.c.0.s8 %v2722
    %v2724 = vlaneseq
    %v2725 = vshrl.u32 %v2724, 7
    %v2726 = vsub.s32 %v2723, %v2725
    %v2727 = vrot.slane %v2713, %v2726
    %v2728 = vcombine.low %v2097, %v2161
    %v2729 = vcombine.high %v2097, %v2161
    %v2731 = vunpack.c.l.s4 1983009808
    %v2732 = vunpack.c.0.s8 %v2731
    %v2733 = vlaneseq
    %v2734 = vshrl.u32 %v2733, 7
    %v2735 = vsub.s32 %v2732, %v2734
    %v2736 = vrot.slane %v2728, %v2735
    %v2738 = vunpack.c.l.s4 1983009808
    %v2739 = vunpack.c.0.s8 %v2738
    %v2740 = vlaneseq
    %v2741 = vshrl.u32 %v2740, 7
    %v2742 = vsub.s32 %v2739, %v2741
    %v2743 = vrot.slane %v2729, %v2742
    %v2744 = vcombine.low %v2193, %v2257
    %v2745 = vcombine.high %v2193, %v2257
    %v2747 = vunpack.c.l.s4 1983009808
    %v2748 = vunpack.c.0.s8 %v2747
    %v2749 = vlaneseq
    %v2750 = vshrl.u32 %v2749, 7
    %v2751 = vsub.s32 %v2748, %v2750
    %v2752 = vrot.slane %v2744, %v2751
    %v2754 = vunpack.c.l.s4 1983009808
    %v2755 = vunpack.c.0.s8 %v2754
    %v2756 = vlaneseq
    %v2757 = vshrl.u32 %v2756, 7
    %v2758 = vsub.s32 %v2755, %v2757
    %v2759 = vrot.slane %v2745, %v2758
    %v2760 = vcombine.low %v2225, %v2289
    %v2761 = vcombine.high %v2225, %v2289
    %v2763 = vunpack.c.l.s4 1983009808
    %v2764 = vunpack.c.0.s8 %v2763
    %v2765 = vlaneseq
    %v2766 = vshrl.u32 %v2765, 7
    %v2767 = vsub.s32 %v2764, %v2766
    %v2768 = vrot.slane %v2760, %v2767
    %v2770 = vunpack.c.l.s4 1983009808
    %v2771 = vunpack.c.0.s8 %v2770
    %v2772 = vlaneseq
    %v2773 = vshrl.u32 %v2772, 7
    %v2774 = vsub.s32 %v2771, %v2773
    %v2775 = vrot.slane %v2761, %v2774
    %v2776 = vcombine.low %v2720, %v2736
    %v2777 = vcombine.high %v2720, %v2736
    %v2779 = vunpack.c.l.s4 1934713408
    %v2780 = vunpack.c.0.s8 %v2779
    %v2781 = vlaneseq
    %v2782 = vshrl.u32 %v2781, 7
    %v2783 = vsub.s32 %v2780, %v2782
    %v2784 = vrot.slane %v2776, %v2783
    %v2786 = vunpack.c.l.s4 1934713408
    %v2787 = vunpack.c.0.s8 %v2786
    %v2788 = vlaneseq
    %v2789 = vshrl.u32 %v2788, 7
    %v2790 = vsub.s32 %v2787, %v2789
    %v2791 = vrot.slane %v2777, %v2790
    %v2792 = vcombine.low %v2727, %v2743
    %v2793 = vcombine.high %v2727, %v2743
    %v2795 = vunpack.c.l.s4 1934713408
    %v2796 = vunpack.c.0.s8 %v2795
    %v2797 = vlaneseq
    %v2798 = vshrl.u32 %v2797, 7
    %v2799 = vsub.s32 %v2796, %v2798
    %v2800 = vrot.slane %v2792, %v2799
    %v2802 = vunpack.c.l.s4 1934713408
    %v2803 = vunpack.c.0.s8 %v2802
    %v2804 = vlaneseq
    %v2805 = vshrl.u32 %v2804, 7
    %v2806 = vsub.s32 %v2803, %v2805
    %v2807 = vrot.slane %v2793, %v2806
    %v2808 = vcombine.low %v2752, %v2768
    %v2809 = vcombine.high %v2752, %v2768
    %v2811 = vunpack.c.l.s4 1934713408
    %v2812 = vunpack.c.0.s8 %v2811
    %v2813 = vlaneseq
    %v2814 = vshrl.u32 %v2813, 7
    %v2815 = vsub.s32 %v2812, %v2814
    %v2816 = vrot.slane %v2808, %v2815
    %v2818 = vunpack.c.l.s4 1934713408
    %v2819 = vunpack.c.0.s8 %v2818
    %v2820 = vlaneseq
    %v2821 = vshrl.u32 %v2820, 7
    %v2822 = vsub.s32 %v2819, %v2821
    %v2823 = vrot.slane %v2809, %v2822
    %v2824 = vcombine.low %v2759, %v2775
    %v2825 = vcombine.high %v2759, %v2775
    %v2827 = vunpack.c.l.s4 1934713408
    %v2828 = vunpack.c.0.s8 %v2827
    %v2829 = vlaneseq
    %v2830 = vshrl.u32 %v2829, 7
    %v2831 = vsub.s32 %v2828, %v2830
    %v2832 = vrot.slane %v2824, %v2831
    %v2834 = vunpack.c.l.s4 1934713408
    %v2835 = vunpack.c.0.s8 %v2834
    %v2836 = vlaneseq
    %v2837 = vshrl.u32 %v2836, 7
    %v2838 = vsub.s32 %v2835, %v2837
    %v2839 = vrot.slane %v2825, %v2838
    %v2840 = vcombine.low %v2784, %v2816
    %v2841 = vcombine.high %v2784, %v2816
    %v2842 = vcombine.low %v2791, %v2823
    %v2843 = vcombine.high %v2791, %v2823
    %v2844 = vcombine.low %v2800, %v2832
    %v2845 = vcombine.high %v2800, %v2832
    %v2846 = vcombine.low %v2807, %v2839
    %v2847 = vcombine.high %v2807, %v2839
    %2850 = vrot.lane.b32.xlu0 %v2433, 4
    %v2851 = vpop.permute.xlu0 %2850
    %2852 = vrot.lane.b32.xlu0 %v2569, 4
    %v2853 = vpop.permute.xlu0 %2852
    %2858 = vrot.lane.b32.xlu0 %v2434, 8
    %v2859 = vpop.permute.xlu0 %2858
    %2860 = vrot.lane.b32.xlu0 %v2570, 8
    %v2861 = vpop.permute.xlu0 %2860
    %2866 = vrot.lane.b32.xlu0 %v2435, 12
    %v2867 = vpop.permute.xlu0 %2866
    %2868 = vrot.lane.b32.xlu0 %v2571, 12
    %v2869 = vpop.permute.xlu0 %2868
    %2874 = vrot.lane.b32.xlu0 %v2436, 16
    %v2875 = vpop.permute.xlu0 %2874
    %2876 = vrot.lane.b32.xlu0 %v2572, 16
    %v2877 = vpop.permute.xlu0 %2876
    %2882 = vrot.lane.b32.xlu0 %v2437, 20
    %v2883 = vpop.permute.xlu0 %2882
    %2884 = vrot.lane.b32.xlu0 %v2573, 20
    %v2885 = vpop.permute.xlu0 %2884
    %2890 = vrot.lane.b32.xlu0 %v2438, 24
    %v2891 = vpop.permute.xlu0 %2890
    %2892 = vrot.lane.b32.xlu0 %v2574, 24
    %v2893 = vpop.permute.xlu0 %2892
    %2898 = vrot.lane.b32.xlu0 %v2439, 28
    %v2899 = vpop.permute.xlu0 %2898
    %2900 = vrot.lane.b32.xlu0 %v2575, 28
    %v2901 = vpop.permute.xlu0 %2900
    %2906 = vrot.lane.b32.xlu0 %v2704, 32
    %v2907 = vpop.permute.xlu0 %2906
    %2908 = vrot.lane.b32.xlu0 %v2840, 32
    %v2909 = vpop.permute.xlu0 %2908
    %2914 = vrot.lane.b32.xlu0 %v2705, 36
    %v2915 = vpop.permute.xlu0 %2914
    %2916 = vrot.lane.b32.xlu0 %v2841, 36
    %v2917 = vpop.permute.xlu0 %2916
    %2922 = vrot.lane.b32.xlu0 %v2706, 40
    %v2923 = vpop.permute.xlu0 %2922
    %2924 = vrot.lane.b32.xlu0 %v2842, 40
    %v2925 = vpop.permute.xlu0 %2924
    %2930 = vrot.lane.b32.xlu0 %v2707, 44
    %v2931 = vpop.permute.xlu0 %2930
    %2932 = vrot.lane.b32.xlu0 %v2843, 44
    %v2933 = vpop.permute.xlu0 %2932
    %2938 = vrot.lane.b32.xlu0 %v2708, 48
    %v2939 = vpop.permute.xlu0 %2938
    %2940 = vrot.lane.b32.xlu0 %v2844, 48
    %v2941 = vpop.permute.xlu0 %2940
    %2946 = vrot.lane.b32.xlu0 %v2709, 52
    %v2947 = vpop.permute.xlu0 %2946
    %2948 = vrot.lane.b32.xlu0 %v2845, 52
    %v2949 = vpop.permute.xlu0 %2948
    %2954 = vrot.lane.b32.xlu0 %v2710, 56
    %v2955 = vpop.permute.xlu0 %2954
    %2956 = vrot.lane.b32.xlu0 %v2846, 56
    %v2957 = vpop.permute.xlu0 %2956
    %2962 = vrot.lane.b32.xlu0 %v2711, 60
    %v2963 = vpop.permute.xlu0 %2962
    %2964 = vrot.lane.b32.xlu0 %v2847, 60
    %v2965 = vpop.permute.xlu0 %2964
    %v2968 = vsel %vm1471, %v2432, %v2851
    %v2969 = vsel %vm1471, %v2568, %v2853
    %v2970 = vsel %vm1474, %v2968, %v2859
    %v2971 = vsel %vm1474, %v2969, %v2861
    %v2972 = vsel %vm1477, %v2970, %v2867
    %v2973 = vsel %vm1477, %v2971, %v2869
    %v2974 = vsel %vm1480, %v2972, %v2875
    %v2975 = vsel %vm1480, %v2973, %v2877
    %v2976 = vsel %vm1483, %v2974, %v2883
    %v2977 = vsel %vm1483, %v2975, %v2885
    %v2978 = vsel %vm1486, %v2976, %v2891
    %v2979 = vsel %vm1486, %v2977, %v2893
    %v2980 = vsel %vm1489, %v2978, %v2899
    %v2981 = vsel %vm1489, %v2979, %v2901
    %v2982 = vsel %vm1492, %v2980, %v2907
    %v2983 = vsel %vm1492, %v2981, %v2909
    %v2984 = vsel %vm1495, %v2982, %v2915
    %v2985 = vsel %vm1495, %v2983, %v2917
    %v2986 = vsel %vm1498, %v2984, %v2923
    %v2987 = vsel %vm1498, %v2985, %v2925
    %v2988 = vsel %vm1501, %v2986, %v2931
    %v2989 = vsel %vm1501, %v2987, %v2933
    %v2990 = vsel %vm1504, %v2988, %v2939
    %v2991 = vsel %vm1504, %v2989, %v2941
    %v2992 = vsel %vm1507, %v2990, %v2947
    %v2993 = vsel %vm1507, %v2991, %v2949
    %v2994 = vsel %vm1510, %v2992, %v2955
    %v2995 = vsel %vm1510, %v2993, %v2957
    %v2996 = vsel %vm1513, %v2994, %v2963
    %v2997 = vsel %vm1513, %v2995, %v2965
    %s2998 = scalar_lea.vmem [#allocation5], 16
    %2999 = vst.msk [vmem:[%s2998] sm:$0xff] %vm1516, %v2996
    %3000 = vst.msk [vmem:[%s2998 + $0x8] sm:$0xff] %vm1516, %v2997
    // Predicated region
    $region10: #{tpu_custom_call.1} parent=1 // pred_check
      _
    $region11: #{tpu_custom_call.1} parent=1 // pred_check_branch
      %3002 = sbr.rel (0) target = $region13
    $region12: #{tpu_custom_call.1} parent=1 // pred_region
      %s3004 = ssub.s32 512, 512
      %3005 = vsyncadd [#allocation4], %s3004
      %s3006 = sshll.u32 [#allocation5], 4
      %s3007 = int_to_ptr.vmem [resolvable:$true] %s3006
      %3012 = dma.vmem_to_hbm [thread:$0]  %s3007, 512, %s1, [#allocation4], 128, 128, 8
    $region13: #{tpu_custom_call.1} parent=1 // pred_fallthru
      _
    // Predicated region
    $region14: #{tpu_custom_call.1} parent=1 // pred_check
      _
    $region15: #{tpu_custom_call.1} parent=1 // pred_check_branch
      %3014 = sbr.rel (0) target = $region17
    $region16: #{tpu_custom_call.1} parent=1 // pred_region
      %3015 = dma.done [#allocation4], 512
    $region17: #{tpu_custom_call.1} parent=1 // pred_fallthru
      _
    %3016 = vsyncpa [#allocation3], 1
    %3017 = vsyncpa [#allocation4], 1

</llo_original>
